<compile_context>
chip_gen: v7x
topology: tpu7x:2x2x1
jax: 0.10.0
libtpu: 0.0.40
codegen_flags: <defaults>
</compile_context>

<pallas_src>
import functools

import jax
import jax.numpy as jnp
from jax.experimental import pallas as pl
from jax.experimental.pallas import tpu as pltpu


def _vq_kernel(x_ref, cb2x_ref, cbt_ref, cb2_ref, row_ref,
               xd_ref, idx_ref, err_ref, cnt_ref,
               *, T, tT, masked, bf16_mm):
    """One (batch n, token-tile t) grid step in native (N, D, T) layout.

    x_ref    : (D, tT)   input tokens (channels on sublanes, tokens on lanes)
    cb2x_ref : (Kp, D)   2 * codebook, zero-padded rows (resident)
    cbt_ref  : (D, Kp)   codebook^T, zero-padded cols (resident)
    cb2_ref  : (Kp, 1)   ||codebook_k||^2, padded rows = +inf (resident)
    row_ref  : (Kp, 1)   f32 row index 0..Kp-1 (resident; no per-step iota)
    xd_ref   : (D, tT)   quantized output tile (input dtype)
    idx_ref  : (1, tT)   nearest-code index, lane-dense
    err_ref  : (1, 1)    this tile's sum of squared error (partial; wrapper reduces)
    cnt_ref  : (Kp, 1)   this tile's code histogram   (partial; wrapper reduces)
    """
    xf = x_ref[...].astype(jnp.float32)                        # (D, tT)

    if bf16_mm:
        lhs = cb2x_ref[...].astype(jnp.bfloat16)
        rhs = x_ref[...].astype(jnp.bfloat16)
    else:
        lhs = cb2x_ref[...]
        rhs = xf
    # Reduced distance: argmin_k ||x - cb_k||^2 == argmin_k (||cb_k||^2 - 2 x.cb_k);
    # the codebook operand is pre-scaled by 2 in the wrapper (exact power-of-2 scale).
    dist = cb2_ref[...] - jnp.dot(lhs, rhs,
                                  preferred_element_type=jnp.float32)  # (Kp, tT)

    kp = dist.shape[0]
    row = row_ref[...]                                          # (Kp, 1) f32
    # First-occurrence argmin along the code (sublane) axis via two min-reduces
    # (matches torch.min tie-breaking).
    dmin = jnp.min(dist, axis=0, keepdims=True)                 # (1, tT)
    code = jnp.min(jnp.where(dist == dmin, row, jnp.float32(kp)),
                   axis=0, keepdims=True)                       # (1, tT)

    if masked:
        # Tokens past the true T get an out-of-range code (match no codebook row:
        # x_d cols stay 0, counts unaffected) and a zeroed dmin; padded x is zero
        # already, so the error term is unaffected too. (1,tT) selects only.
        t = pl.program_id(1)
        lane = jax.lax.broadcasted_iota(jnp.int32, (1, tT), 1)
        valid = (t * tT + lane) < T
        code = jnp.where(valid, code, jnp.float32(kp))
        dmin = jnp.where(valid, dmin, 0.0)

    onehot = (row == code).astype(jnp.float32)                  # (Kp, tT)

    # Dequantize on the MXU: (D, Kp) @ (Kp, tT) -> (D, tT).
    if bf16_mm:
        x_d = jnp.dot(cbt_ref[...].astype(jnp.bfloat16),
                      onehot.astype(jnp.bfloat16),
                      preferred_element_type=jnp.float32)
    else:
        x_d = jnp.dot(cbt_ref[...], onehot, preferred_element_type=jnp.float32)

    xd_ref[...] = x_d.astype(xd_ref.dtype)
    idx_ref[...] = code.astype(jnp.int32)

    # Per-tile partial statistics (wrapper reduces them; keeps both grid axes parallel).
    # sum ||x - x_d||^2 over this tile == sum ||x||^2 + sum dmin (masked above).
    err_ref[...] = (jnp.sum(xf * xf) + jnp.sum(dmin)).reshape(1, 1)
    # Histogram on the MXU instead of a (Kp, tT) cross-lane XLU reduce.
    cnt_ref[...] = jnp.dot(onehot, jnp.ones((tT, 1), jnp.float32),
                           preferred_element_type=jnp.float32)


def _round_up(v, m):
    return -(-v // m) * m


def _estimate_vmem_bytes(D, Kp, tT, x_itemsize, out_itemsize):
    """Per-step VMEM footprint: 2-deep pipelined I/O tiles + double-buffered
    resident codebook blocks + (Kp,tT)/(D,tT) f32 temporaries."""
    io = 2 * D * tT * x_itemsize          # x tile (in)
    io += 2 * D * tT * out_itemsize       # x_d tile (out)
    io += 2 * tT * 4                      # idx tile (out)
    io += 2 * (Kp * 4 + 4)                # cnt / err partial tiles (out)
    resident = 2 * (2 * Kp * D * 4 + 2 * Kp * 4)   # cb2x + cbt (+ cb2, row), 2 buffers
    tmp = 4 * Kp * tT * 4 + 3 * D * tT * 4         # dist/onehot/selects, f32 x & x_d
    return io + resident + tmp


def _pick_token_tile(T, D, Kp, x_itemsize, out_itemsize, *,
                     cap=1024, budget=28 * 2**20):
    """Pick (tT, Tp): token tile and padded token length.

    Full-T tile when T is small and fits the VMEM budget (no padding / masking);
    otherwise the largest lane-aligned (multiple-of-128) tile <= cap that fits the
    budget while keeping padding waste within ~12.5% of round_up(T, 128). The cap
    / budget are generation-safe (fit v7x's 64 MiB physical VMEM)."""
    if T <= cap and _estimate_vmem_bytes(D, Kp, T, x_itemsize, out_itemsize) <= budget:
        return T, T
    tp_min = _round_up(T, 128)
    for k in range(cap // 128, 0, -1):
        tt = k * 128
        if _estimate_vmem_bytes(D, Kp, tt, x_itemsize, out_itemsize) > budget:
            continue
        tp = _round_up(T, tt)
        if 8 * tp <= 9 * tp_min:              # <= ~12.5% padding over the minimum
            return tt, tp
    return 128, tp_min


@functools.partial(jax.jit, static_argnames=("use_bf16_matmul",))
def quantize_ema_forward(x_nct, codebook, *, use_bf16_matmul=False):
    """Eval-mode forward of QuantizeEMA_h2vq.

    x_nct: (N, code_dim, T);  codebook: (nb_code, code_dim) float32.
    Returns (x_d (N, code_dim, T), commit_loss, perplexity, code_idx (N*T,)).

    use_bf16_matmul=True runs both MXU matmuls in bf16 (3-6x MXU throughput on
    v5e/v6e/v7x) at the cost of bf16-rounded x_d and possible argmin flips on
    near-ties; the default keeps exact f32 semantics.
    """
    N, D, T = x_nct.shape
    K, Dc = codebook.shape
    assert D == Dc

    Kp = _round_up(K, 128)                       # lane-dense codebook axis
    out_dtype = x_nct.dtype
    itemsize = jnp.dtype(out_dtype).itemsize
    tT, Tp = _pick_token_tile(T, D, Kp, itemsize, itemsize)
    nT = Tp // tT

    # x stays in its native dtype / NCT layout (the kernel upcasts tiles in VMEM);
    # pad T only when the chosen tile demands it.
    x_in = x_nct if Tp == T else jnp.pad(x_nct, ((0, 0), (0, 0), (0, Tp - T)))

    cb = codebook.astype(jnp.float32)
    cb2 = jnp.sum(cb * cb, axis=-1, keepdims=True)               # (K, 1), hoisted
    if Kp != K:
        cb = jnp.pad(cb, ((0, Kp - K), (0, 0)))
        cb2 = jnp.concatenate(
            [cb2, jnp.full((Kp - K, 1), jnp.inf, jnp.float32)], axis=0)
    cb2x = 2.0 * cb                                              # pre-scaled distance operand
    cbt = cb.T                                                   # (D, Kp), for dequantize
    row = jnp.arange(Kp, dtype=jnp.float32).reshape(Kp, 1)       # hoisted row index

    kernel = functools.partial(_vq_kernel, T=T, tT=tT,
                               masked=(Tp != T), bf16_mm=use_bf16_matmul)

    est = _estimate_vmem_bytes(D, Kp, tT, itemsize, itemsize)
    vmem_limit = int(min(48 * 2**20, max(32 * 2**20, est + 8 * 2**20)))

    xd, idx, err, cnt = pl.pallas_call(
        kernel,
        out_shape=(
            jax.ShapeDtypeStruct((N, D, Tp), out_dtype),       # x_d, native NCT layout
            jax.ShapeDtypeStruct((N, 1, Tp), jnp.int32),       # code_idx, lane-dense
            jax.ShapeDtypeStruct((N, nT, 1, 1), jnp.float32),  # per-tile sq-err partials
            jax.ShapeDtypeStruct((N, nT, Kp, 1), jnp.float32), # per-tile code counts
        ),
        grid_spec=pltpu.PrefetchScalarGridSpec(
            num_scalar_prefetch=0,
            grid=(N, nT),
            in_specs=[
                pl.BlockSpec((None, D, tT), lambda n, t: (n, 0, t)),
                pl.BlockSpec((Kp, D), lambda n, t: (0, 0)),    # 2*codebook, resident
                pl.BlockSpec((D, Kp), lambda n, t: (0, 0)),    # codebook^T, resident
                pl.BlockSpec((Kp, 1), lambda n, t: (0, 0)),    # ||cb||^2, resident
                pl.BlockSpec((Kp, 1), lambda n, t: (0, 0)),    # row index, resident
            ],
            out_specs=[
                pl.BlockSpec((None, D, tT), lambda n, t: (n, 0, t)),
                pl.BlockSpec((None, 1, tT), lambda n, t: (n, 0, t)),
                pl.BlockSpec((None, None, 1, 1), lambda n, t: (n, t, 0, 0)),
                pl.BlockSpec((None, None, Kp, 1), lambda n, t: (n, t, 0, 0)),
            ],
        ),
        compiler_params=pltpu.CompilerParams(
            # Per-tile partial outputs -> no cross-step carry, so both axes are
            # parallel (megacore split on v7x even for N == 1).
            dimension_semantics=("parallel", "parallel"),
            vmem_limit_bytes=vmem_limit,
        ),
    )(x_in, cb2x, cbt, cb2, row)

    commit_loss = jnp.sum(err) / jnp.float32(N * T * D)

    counts = jnp.sum(cnt[:, :, :K, 0], axis=(0, 1))              # strip padded codes
    prob = counts / jnp.sum(counts)
    perplexity = jnp.exp(-jnp.sum(prob * jnp.log(prob + 1e-7)))

    x_d = xd[:, :, :T]                                           # already (N, code_dim, T)
    code_idx = idx[:, 0, :T].reshape(-1)                         # (N*T,), token-major
    return x_d, commit_loss, perplexity, code_idx


def _reference(x_nct, codebook):
    """Pure-JAX reference of the module's eval forward.

    The argmin uses the reduced distance (-2 x.cb + ||cb||^2); the module's extra
    per-token constant ||x||^2 cannot change the argmin, so this is the same
    function up to fp rounding.
    """
    N, D, T = x_nct.shape
    x = jnp.transpose(x_nct, (0, 2, 1)).reshape(-1, D)
    dist = -2.0 * (x @ codebook.T) + jnp.sum(codebook ** 2, axis=-1)[None, :]
    idx = jnp.argmin(dist, axis=-1)
    x_d = codebook[idx]
    commit = jnp.mean((x - x_d) ** 2)
    counts = jnp.bincount(idx, length=codebook.shape[0]).astype(jnp.float32)
    prob = counts / jnp.sum(counts)
    ppl = jnp.exp(-jnp.sum(prob * jnp.log(prob + 1e-7)))
    return x_d.reshape(N, T, D).transpose(0, 2, 1), commit, ppl, idx


if __name__ == "__main__":
    key = jax.random.PRNGKey(0)
    k1, k2, k3 = jax.random.split(key, 3)

    # Small case, same layout as the module: x is (N, width=code_dim, T).
    N, code_dim, T = 2, 32, 16
    nb_code = 64
    x = jax.random.normal(k1, (N, code_dim, T), dtype=jnp.float32)
    # reset_codebook() gives an all-zero codebook (degenerate for the eval path);
    # use a small random init instead.
    codebook = 0.02 * jax.random.normal(k2, (nb_code, code_dim), dtype=jnp.float32)

    x_d, commit_loss, perplexity, code_idx = quantize_ema_forward(x, codebook)
    jax.block_until_ready((x_d, commit_loss, perplexity, code_idx))

    x_d_r, commit_r, ppl_r, idx_r = _reference(x, codebook)
    assert x_d.shape == (N, code_dim, T)
    assert code_idx.shape == (N * T,)
    assert jnp.array_equal(code_idx, idx_r)
    assert jnp.allclose(x_d, x_d_r, atol=1e-5)
    assert jnp.allclose(commit_loss, commit_r, rtol=1e-4, atol=1e-6)
    assert jnp.allclose(perplexity, ppl_r, rtol=1e-4)

    # Larger ragged case exercising the T-tiling + bounded padding + in-kernel
    # masked tail (T=2100 -> tT=768, Tp=2304 instead of the old 2048/4096).
    N2, T2 = 2, 2100
    x2 = jax.random.normal(k3, (N2, code_dim, T2), dtype=jnp.float32)
    x_d2, commit2, ppl2, idx2 = quantize_ema_forward(x2, codebook)
    jax.block_until_ready((x_d2, commit2, ppl2, idx2))

    assert x_d2.shape == (N2, code_dim, T2)
    assert idx2.shape == (N2 * T2,)
    # Self-consistency checks (robust to rare f32 near-ties in nearest-code choice):
    xt2 = jnp.transpose(x2, (0, 2, 1)).reshape(-1, code_dim)
    xd2_tok = jnp.transpose(x_d2, (0, 2, 1)).reshape(-1, code_dim)
    assert jnp.allclose(xd2_tok, codebook[idx2], atol=1e-6)          # dequantize == gather
    assert jnp.allclose(commit2, jnp.mean((xt2 - xd2_tok) ** 2), rtol=1e-4, atol=1e-6)
    cnts2 = jnp.bincount(idx2, length=nb_code).astype(jnp.float32)
    prob2 = cnts2 / jnp.sum(cnts2)
    assert jnp.allclose(ppl2, jnp.exp(-jnp.sum(prob2 * jnp.log(prob2 + 1e-7))), rtol=1e-4)
    # Nearest-code agreement with the XLA reference (tolerate rare fp ties).
    _, _, _, idx2_r = _reference(x2, codebook)
    assert float(jnp.mean((idx2 == idx2_r).astype(jnp.float32))) > 0.999

    print("KERNEL_OK")
</pallas_src>

<mosaic_0001>
module attributes {stable_mosaic.version = 11 : i64} {
  func.func @_vq_kernel(%arg0: i32, %arg1: i32, %arg2: memref<1x32x16xf32, #tpu.memory_space<vmem>>, %arg3: memref<128x32xf32, #tpu.memory_space<vmem>>, %arg4: memref<32x128xf32, #tpu.memory_space<vmem>>, %arg5: memref<128x1xf32, #tpu.memory_space<vmem>>, %arg6: memref<128x1xf32, #tpu.memory_space<vmem>>, %arg7: memref<1x32x16xf32, #tpu.memory_space<vmem>>, %arg8: memref<1x1x16xi32, #tpu.memory_space<vmem>>, %arg9: memref<1x1x1x1xf32, #tpu.memory_space<vmem>>, %arg10: memref<1x1x128x1xf32, #tpu.memory_space<vmem>>) attributes {dimension_semantics = [#tpu.dimension_semantics<parallel>, #tpu.dimension_semantics<parallel>], iteration_bounds = array<i64: 2, 1>, scalar_prefetch = 0 : i64, scratch_operands = 0 : i64, tpu.core_type = #tpu.core_type<tc>, window_params = [{transform_indices = @transform_0, window_bounds = array<i64: 1, 32, 16>}, {pipeline_mode = #tpu.pipeline_mode<synchronous>, transform_indices = @transform_1, window_bounds = array<i64: 128, 32>}, {pipeline_mode = #tpu.pipeline_mode<synchronous>, transform_indices = @transform_2, window_bounds = array<i64: 32, 128>}, {pipeline_mode = #tpu.pipeline_mode<synchronous>, transform_indices = @transform_3, window_bounds = array<i64: 128, 1>}, {pipeline_mode = #tpu.pipeline_mode<synchronous>, transform_indices = @transform_4, window_bounds = array<i64: 128, 1>}, {transform_indices = @transform_5, window_bounds = array<i64: 1, 32, 16>}, {transform_indices = @transform_6, window_bounds = array<i64: 1, 1, 16>}, {transform_indices = @transform_7, window_bounds = array<i64: 1, 1, 1, 1>}, {transform_indices = @transform_8, window_bounds = array<i64: 1, 1, 128, 1>}]} {
    %c0 = arith.constant 0 : index
    %c0_0 = arith.constant 0 : index
    %c0_1 = arith.constant 0 : index
    %0 = vector.load %arg2[%c0, %c0_0, %c0_1] : memref<1x32x16xf32, #tpu.memory_space<vmem>>, vector<1x32x16xf32>
    %1 = vector.shape_cast %0 : vector<1x32x16xf32> to vector<32x16xf32>
    %c0_2 = arith.constant 0 : index
    %c0_3 = arith.constant 0 : index
    %2 = vector.load %arg3[%c0_2, %c0_3] : memref<128x32xf32, #tpu.memory_space<vmem>>, vector<128x32xf32>
    %c0_4 = arith.constant 0 : index
    %c0_5 = arith.constant 0 : index
    %3 = vector.load %arg5[%c0_4, %c0_5] : memref<128x1xf32, #tpu.memory_space<vmem>>, vector<128x1xf32>
    %cst = arith.constant dense<0.000000e+00> : vector<128x16xf32>
    %4 = tpu.matmul %2, %1, %cst {dimension_numbers = #tpu.dot_dimension_numbers<[1], [0], [0], [1], [0, 0, 1, 1], [], []>} : vector<128x32xf32>, vector<32x16xf32>, vector<128x16xf32> -> vector<128x16xf32>
    %5 = vector.broadcast %3 : vector<128x1xf32> to vector<128x16xf32>
    %6 = arith.subf %5, %4 : vector<128x16xf32>
    %c0_6 = arith.constant 0 : index
    %c0_7 = arith.constant 0 : index
    %7 = vector.load %arg6[%c0_6, %c0_7] : memref<128x1xf32, #tpu.memory_space<vmem>>, vector<128x1xf32>
    %cst_8 = arith.constant dense<0x7F800000> : vector<16xf32>
    %8 = vector.multi_reduction <minimumf>, %6, %cst_8 [0] : vector<128x16xf32> to vector<16xf32>
    %9 = vector.shape_cast %8 : vector<16xf32> to vector<1x16xf32>
    %10 = vector.broadcast %9 : vector<1x16xf32> to vector<128x16xf32>
    %11 = arith.cmpf oeq, %6, %10 : vector<128x16xf32>
    %cst_9 = arith.constant 1.280000e+02 : f32
    %12 = vector.shape_cast %7 : vector<128x1xf32> to vector<128x1xf32>
    %13 = vector.broadcast %12 : vector<128x1xf32> to vector<128x16xf32>
    %14 = vector.broadcast %cst_9 : f32 to vector<128x16xf32>
    %15 = arith.select %11, %13, %14 : vector<128x16xi1>, vector<128x16xf32>
    %cst_10 = arith.constant dense<0x7F800000> : vector<16xf32>
    %16 = vector.multi_reduction <minimumf>, %15, %cst_10 [0] : vector<128x16xf32> to vector<16xf32>
    %17 = vector.shape_cast %16 : vector<16xf32> to vector<1x16xf32>
    %18 = vector.broadcast %7 : vector<128x1xf32> to vector<128x16xf32>
    %19 = vector.broadcast %17 : vector<1x16xf32> to vector<128x16xf32>
    %20 = arith.cmpf oeq, %18, %19 : vector<128x16xf32>
    %21 = arith.extui %20 : vector<128x16xi1> to vector<128x16xi32>
    %22 = arith.sitofp %21 : vector<128x16xi32> to vector<128x16xf32>
    %c0_11 = arith.constant 0 : index
    %c0_12 = arith.constant 0 : index
    %23 = vector.load %arg4[%c0_11, %c0_12] : memref<32x128xf32, #tpu.memory_space<vmem>>, vector<32x128xf32>
    %cst_13 = arith.constant dense<0.000000e+00> : vector<32x16xf32>
    %24 = tpu.matmul %23, %22, %cst_13 {dimension_numbers = #tpu.dot_dimension_numbers<[1], [0], [0], [1], [0, 0, 1, 1], [], []>} : vector<32x128xf32>, vector<128x16xf32>, vector<32x16xf32> -> vector<32x16xf32>
    %c0_14 = arith.constant 0 : index
    %c0_15 = arith.constant 0 : index
    %c0_16 = arith.constant 0 : index
    %25 = vector.load %arg7[%c0_14, %c0_15, %c0_16] : memref<1x32x16xf32, #tpu.memory_space<vmem>>, vector<1x32x16xf32>
    %26 = vector.shape_cast %25 : vector<1x32x16xf32> to vector<32x16xf32>
    %27 = vector.shape_cast %24 : vector<32x16xf32> to vector<1x32x16xf32>
    tpu.vector_store %arg7[%c0_14, %c0_15, %c0_16], %27 {strides = array<i32>} : memref<1x32x16xf32, #tpu.memory_space<vmem>>, vector<1x32x16xf32>,
    %28 = arith.fptosi %17 : vector<1x16xf32> to vector<1x16xi32>
    %c0_17 = arith.constant 0 : index
    %c0_18 = arith.constant 0 : index
    %c0_19 = arith.constant 0 : index
    %29 = vector.load %arg8[%c0_17, %c0_18, %c0_19] : memref<1x1x16xi32, #tpu.memory_space<vmem>>, vector<1x1x16xi32>
    %30 = vector.shape_cast %29 : vector<1x1x16xi32> to vector<1x16xi32>
    %31 = vector.shape_cast %28 : vector<1x16xi32> to vector<1x1x16xi32>
    tpu.vector_store %arg8[%c0_17, %c0_18, %c0_19], %31 {strides = array<i32>} : memref<1x1x16xi32, #tpu.memory_space<vmem>>, vector<1x1x16xi32>,
    %32 = arith.mulf %1, %1 : vector<32x16xf32>
    %33 = vector.shape_cast %32 : vector<32x16xf32> to vector<1x32x16xf32>
    %cst_20 = arith.constant dense<0.000000e+00> : vector<1xf32>
    %34 = vector.multi_reduction <add>, %33, %cst_20 [1, 2] : vector<1x32x16xf32> to vector<1xf32>
    %35 = vector.shape_cast %34 : vector<1xf32> to vector<1x1x1xf32>
    %36 = vector.extract %35[0, 0, 0] : f32 from vector<1x1x1xf32>
    %37 = vector.shape_cast %9 : vector<1x16xf32> to vector<1x1x16xf32>
    %cst_21 = arith.constant dense<0.000000e+00> : vector<1xf32>
    %38 = vector.multi_reduction <add>, %37, %cst_21 [1, 2] : vector<1x1x16xf32> to vector<1xf32>
    %39 = vector.shape_cast %38 : vector<1xf32> to vector<1x1x1xf32>
    %40 = vector.extract %39[0, 0, 0] : f32 from vector<1x1x1xf32>
    %41 = arith.addf %36, %40 : f32
    %42 = vector.broadcast %41 : f32 to vector<1x1xf32>
    %c0_22 = arith.constant 0 : index
    %c0_23 = arith.constant 0 : index
    %c0_24 = arith.constant 0 : index
    %c0_25 = arith.constant 0 : index
    %43 = vector.load %arg9[%c0_22, %c0_23, %c0_24, %c0_25] : memref<1x1x1x1xf32, #tpu.memory_space<vmem>>, vector<1x1x1x1xf32>
    %44 = vector.shape_cast %43 : vector<1x1x1x1xf32> to vector<1x1xf32>
    %45 = vector.shape_cast %42 : vector<1x1xf32> to vector<1x1x1x1xf32>
    tpu.vector_store %arg9[%c0_22, %c0_23, %c0_24, %c0_25], %45 {strides = array<i32>} : memref<1x1x1x1xf32, #tpu.memory_space<vmem>>, vector<1x1x1x1xf32>,
    %cst_26 = arith.constant 1.000000e+00 : f32
    %46 = vector.broadcast %cst_26 : f32 to vector<16x1xf32>
    %cst_27 = arith.constant dense<0.000000e+00> : vector<128x1xf32>
    %47 = tpu.matmul %22, %46, %cst_27 {dimension_numbers = #tpu.dot_dimension_numbers<[1], [0], [0], [1], [0, 0, 1, 1], [], []>} : vector<128x16xf32>, vector<16x1xf32>, vector<128x1xf32> -> vector<128x1xf32>
    %c0_28 = arith.constant 0 : index
    %c0_29 = arith.constant 0 : index
    %c0_30 = arith.constant 0 : index
    %c0_31 = arith.constant 0 : index
    %48 = vector.load %arg10[%c0_28, %c0_29, %c0_30, %c0_31] : memref<1x1x128x1xf32, #tpu.memory_space<vmem>>, vector<1x1x128x1xf32>
    %49 = vector.shape_cast %48 : vector<1x1x128x1xf32> to vector<128x1xf32>
    %50 = vector.shape_cast %47 : vector<128x1xf32> to vector<1x1x128x1xf32>
    tpu.vector_store %arg10[%c0_28, %c0_29, %c0_30, %c0_31], %50 {strides = array<i32>} : memref<1x1x128x1xf32, #tpu.memory_space<vmem>>, vector<1x1x128x1xf32>,
    return
  }
  func.func @transform_0(%arg0: i32, %arg1: i32) -> (i32, i32, i32) {
    %c0_i32 = arith.constant 0 : i32
    %c0_i32_0 = arith.constant 0 : i32
    return %arg0, %c0_i32, %arg1 : i32, i32, i32
  }
  func.func @transform_1(%arg0: i32, %arg1: i32) -> (i32, i32) {
    %c0_i32 = arith.constant 0 : i32
    %c0_i32_0 = arith.constant 0 : i32
    %c0_i32_1 = arith.constant 0 : i32
    return %c0_i32, %c0_i32_0 : i32, i32
  }
  func.func @transform_2(%arg0: i32, %arg1: i32) -> (i32, i32) {
    %c0_i32 = arith.constant 0 : i32
    %c0_i32_0 = arith.constant 0 : i32
    %c0_i32_1 = arith.constant 0 : i32
    return %c0_i32, %c0_i32_0 : i32, i32
  }
  func.func @transform_3(%arg0: i32, %arg1: i32) -> (i32, i32) {
    %c0_i32 = arith.constant 0 : i32
    %c0_i32_0 = arith.constant 0 : i32
    %c0_i32_1 = arith.constant 0 : i32
    return %c0_i32, %c0_i32_0 : i32, i32
  }
  func.func @transform_4(%arg0: i32, %arg1: i32) -> (i32, i32) {
    %c0_i32 = arith.constant 0 : i32
    %c0_i32_0 = arith.constant 0 : i32
    %c0_i32_1 = arith.constant 0 : i32
    return %c0_i32, %c0_i32_0 : i32, i32
  }
  func.func @transform_5(%arg0: i32, %arg1: i32) -> (i32, i32, i32) {
    %c0_i32 = arith.constant 0 : i32
    %c0_i32_0 = arith.constant 0 : i32
    return %arg0, %c0_i32, %arg1 : i32, i32, i32
  }
  func.func @transform_6(%arg0: i32, %arg1: i32) -> (i32, i32, i32) {
    %c0_i32 = arith.constant 0 : i32
    %c0_i32_0 = arith.constant 0 : i32
    return %arg0, %c0_i32, %arg1 : i32, i32, i32
  }
  func.func @transform_7(%arg0: i32, %arg1: i32) -> (i32, i32, i32, i32) {
    %c0_i32 = arith.constant 0 : i32
    %c0_i32_0 = arith.constant 0 : i32
    %c0_i32_1 = arith.constant 0 : i32
    return %arg0, %arg1, %c0_i32, %c0_i32_0 : i32, i32, i32, i32
  }
  func.func @transform_8(%arg0: i32, %arg1: i32) -> (i32, i32, i32, i32) {
    %c0_i32 = arith.constant 0 : i32
    %c0_i32_0 = arith.constant 0 : i32
    %c0_i32_1 = arith.constant 0 : i32
    return %arg0, %arg1, %c0_i32, %c0_i32_0 : i32, i32, i32, i32
  }
}

</mosaic_0001>

<llo_original>
// kernel: squeeze.3
$region0: #{squeeze.3}
  %s0 = inlined_call_operand.vmem [shape: s32[2,16], index: 0, kind: input, shape index: {}]
  %s1 = inlined_call_operand.hbm [shape: s32[32], index: 1, kind: output, shape index: {}]
  $region1: #{squeeze.3} parent=0
    #allocation0 [shape = 'u8[512]{0}', space=vmem, size = 0x400, scoped, tag = 'operand span for operand 1']
    #allocation1 [shape = 's32[1]{0}', space=sflag, size = 0x4, scoped, tag = 'scoped memory for squeeze.3']
    #allocation2 [shape = 'u8[4096]{0}', space=vmem, size = 0x1000, scoped, tag = 'scoped mem for output reshape']
    #allocation3 [shape = 'u8[4096]{0}', space=vmem, size = 0x1000, scoped, tag = 'scoped mem for input reshape']
    %2 = vsyncpa [#allocation1], 0
    %s4 = sshllo.u32 0, 2
    %v5 = vld [vmem:[%s0] sm:%s4]
    %6 = vst [vmem:[#allocation3] sm:%s4] %v5
    %v7 = vld [vmem:[#allocation3] sm:$0x1]
    %vm8 = vcmask 130048
    %9 = vst.msk [vmem:[#allocation2] sm:$0x1] %vm8, %v7
    %s10 = scalar_lea.vmem [#allocation3], 1
    %v11 = vld [vmem:[%s10] sm:$0x1]
    %12 = vrot.lane.b32.xlu0 %v11, 16
    %v13 = vpop.permute.xlu0 %12
    %vm14 = vcmask 261248
    %15 = vst.msk [vmem:[#allocation2] sm:$0x1] %vm14, %v13
    %s17 = sshllo.u32 0, 1
    %v19 = vld [vmem:[#allocation2] sm:%s17]
    %s20 = sshllo.u32 0, 1
    %21 = vst [vmem:[#allocation0] sm:%s20] %v19
    %s23 = ssub.s32 16, 16
    %24 = vsyncadd [#allocation1], %s23
    %s26 = sshll.u32 [#allocation0], 4
    %s27 = int_to_ptr.vmem [resolvable:$true] %s26
    %29 = dma.vmem_to_hbm [thread:$0]  %s27, 16, %s1, [#allocation1]
    %30 = dma.done [#allocation1], 16
    %31 = vsyncpa [#allocation1], 1

// kernel: quantize_ema_forward.1
$region0: #{quantize_ema_forward.1}
  #allocation0 [shape = 'u32[]', space=smem, size = 0x4, offset = 0x4, fixed_abs, tag = 'smem constant byte address 0x4 - core index']
  #allocation1 [shape = 'u32[144,128]{1,0:T(1,128)}', space=vmem, size = 0x12000, scoped, tag = 'internal scratch']
  %s0 = inlined_call_operand.vmem [shape: f32[2,32,16], index: 0, kind: input, shape index: {}]
  %s1 = inlined_call_operand.vmem [shape: f32[128,32], index: 1, kind: input, shape index: {}]
  %s2 = inlined_call_operand.vmem [shape: f32[32,128], index: 2, kind: input, shape index: {}]
  %s3 = inlined_call_operand.vmem [shape: f32[128,1], index: 3, kind: input, shape index: {}]
  %s4 = inlined_call_operand.vmem [shape: f32[128,1], index: 4, kind: input, shape index: {}]
  %s5 = inlined_call_operand.vmem [shape: f32[2,32,16], index: 5, kind: output, shape index: {0}]
  %s6 = inlined_call_operand.vmem [shape: s32[2,1,16], index: 6, kind: output, shape index: {1}]
  %s7 = inlined_call_operand.vmem [shape: f32[2,1,1,1], index: 7, kind: output, shape index: {2}]
  %s8 = inlined_call_operand.vmem [shape: f32[2,1,128,1], index: 8, kind: output, shape index: {3}]
  %9 = xla_tuple %s5, %s6, %s7, %s8
  %s10 = sld [smem:[#allocation0]]
  $region77: #{quantize_ema_forward.1} parent=0
    _
  %s12 = ssub.s32 1, %s10
  %s13 = scalar_select 0, %s12, %s10
  loop: start=0, step=1, limit=4
  $region2: #{quantize_ema_forward.1} parent=0 // loop_pre_header
    _
  $region3: #{quantize_ema_forward.1} parent=0 // loop_header
    %s15 = sphi 0, %s19
    %p16 = scmp.ge.s32.totalorder %s15, 4
    %s22 = sphi 0, %s34
    %s23 = sphi 0, %s30
    %s24 = sphi 0, %s22
    %s25 = sphi 0, %s23
    %s26 = sphi 0, %s24
    %s27 = sphi 0, %s25
    %s39 = sphi 0, %s41
    %s42 = sphi 0, %s39
    %s43 = sphi 0, %s42
    %s59 = sphi 0, %s43
    %s63 = sphi 0, %s63
    %s65 = sphi 0, %s63
    %s66 = sphi 0, %s65
    %s80 = sphi 0, %s66
    %s84 = sphi 0, %s84
    %s86 = sphi 0, %s84
    %s87 = sphi 0, %s86
    %s101 = sphi 0, %s87
    %s105 = sphi 0, %s105
    %s107 = sphi 0, %s105
    %s108 = sphi 0, %s107
    %s122 = sphi 0, %s108
    %s126 = sphi 0, %s126
    %s128 = sphi 0, %s126
    %s129 = sphi 0, %s128
    %s143 = sphi 0, %s129
    %s151 = sphi 0, %s153
    %s154 = sphi 0, %s151
    %s155 = sphi 0, %s154
    %s171 = sphi 0, %s155
    %s179 = sphi 0, %s181
    %s182 = sphi 0, %s179
    %s183 = sphi 0, %s182
    %s199 = sphi 0, %s183
    %s207 = sphi 0, %s209
    %s210 = sphi 0, %s207
    %s211 = sphi 0, %s210
    %s227 = sphi 0, %s211
    %s235 = sphi 0, %s237
    %s238 = sphi 0, %s235
    %s239 = sphi 0, %s238
    %s255 = sphi 0, %s239
  $region4: #{quantize_ema_forward.1} parent=0 // loop_header_branch
    %18 = sbr.rel (%p16) target = $region8
  $region5: #{quantize_ema_forward.1} parent=0 // loop_body
    %s20 = ssub.s32 %s15, 1
    %s21 = ssub.s32 %s15, 2
    %s28 = sadd.s32 1, %s23
    %p29 = scmp.ge.s32.totalorder %s28, 1
    %s30 = scalar_select %p29, 0, %s28
    %s31 = sadd.s32 1, %s22
    %s32 = scalar_select %p29, %s31, %s22
    %p33 = scmp.ge.s32.totalorder %s32, 2
    %s34 = scalar_select %p33, 0, %s32
    %s35 = ssub.s32 %s22, %s34
    %s36 = ssub.s32 %s23, %s30
    %s37 = sor.u32 %s35, %s36
    %p38 = scmp.eq.s32.totalorder %s37, 0
    %s40 = sadd.s32 %s39, 1
    %s41 = scalar_select %p38, %s39, %s40
    %p44 = pneg %p38
    %p45 = scmp.eq.s32.totalorder %s15, 1
    %p46 = por %p44, %p45
    %p47 = scmp.ne.s32.totalorder %s39, %s42
    %p48 = scmp.eq.s32.totalorder %s15, 0
    %p49 = por %p47, %p48
    %p50 = scmp.ne.s32.totalorder %s39, %s42
    %p51 = scmp.eq.s32.totalorder %s20, 1
    %p52 = por %p50, %p51
    %p53 = scmp.ne.s32.totalorder %s42, %s43
    %p54 = scmp.eq.s32.totalorder %s20, 0
    %p55 = por %p53, %p54
    %p56 = scmp.ne.s32.totalorder %s42, %s43
    %p57 = scmp.eq.s32.totalorder %s21, 1
    %p58 = por %p56, %p57
    %p60 = scmp.ne.s32.totalorder %s43, %s59
    %p61 = scmp.eq.s32.totalorder %s21, 0
    %p62 = por %p60, %p61
    %s64 = sadd.s32 %s63, 1
    %p67 = scmp.eq.s32.totalorder %s15, 1
    %p68 = scmp.ne.s32.totalorder %s63, %s65
    %p69 = scmp.eq.s32.totalorder %s15, 0
    %p70 = por %p68, %p69
    %p71 = scmp.ne.s32.totalorder %s63, %s65
    %p72 = scmp.eq.s32.totalorder %s20, 1
    %p73 = por %p71, %p72
    %p74 = scmp.ne.s32.totalorder %s65, %s66
    %p75 = scmp.eq.s32.totalorder %s20, 0
    %p76 = por %p74, %p75
    %p77 = scmp.ne.s32.totalorder %s65, %s66
    %p78 = scmp.eq.s32.totalorder %s21, 1
    %p79 = por %p77, %p78
    %p81 = scmp.ne.s32.totalorder %s66, %s80
    %p82 = scmp.eq.s32.totalorder %s21, 0
    %p83 = por %p81, %p82
    %s85 = sadd.s32 %s84, 1
    %p88 = scmp.eq.s32.totalorder %s15, 1
    %p89 = scmp.ne.s32.totalorder %s84, %s86
    %p90 = scmp.eq.s32.totalorder %s15, 0
    %p91 = por %p89, %p90
    %p92 = scmp.ne.s32.totalorder %s84, %s86
    %p93 = scmp.eq.s32.totalorder %s20, 1
    %p94 = por %p92, %p93
    %p95 = scmp.ne.s32.totalorder %s86, %s87
    %p96 = scmp.eq.s32.totalorder %s20, 0
    %p97 = por %p95, %p96
    %p98 = scmp.ne.s32.totalorder %s86, %s87
    %p99 = scmp.eq.s32.totalorder %s21, 1
    %p100 = por %p98, %p99
    %p102 = scmp.ne.s32.totalorder %s87, %s101
    %p103 = scmp.eq.s32.totalorder %s21, 0
    %p104 = por %p102, %p103
    %s106 = sadd.s32 %s105, 1
    %p109 = scmp.eq.s32.totalorder %s15, 1
    %p110 = scmp.ne.s32.totalorder %s105, %s107
    %p111 = scmp.eq.s32.totalorder %s15, 0
    %p112 = por %p110, %p111
    %p113 = scmp.ne.s32.totalorder %s105, %s107
    %p114 = scmp.eq.s32.totalorder %s20, 1
    %p115 = por %p113, %p114
    %p116 = scmp.ne.s32.totalorder %s107, %s108
    %p117 = scmp.eq.s32.totalorder %s20, 0
    %p118 = por %p116, %p117
    %p119 = scmp.ne.s32.totalorder %s107, %s108
    %p120 = scmp.eq.s32.totalorder %s21, 1
    %p121 = por %p119, %p120
    %p123 = scmp.ne.s32.totalorder %s108, %s122
    %p124 = scmp.eq.s32.totalorder %s21, 0
    %p125 = por %p123, %p124
    %s127 = sadd.s32 %s126, 1
    %p130 = scmp.eq.s32.totalorder %s15, 1
    %p131 = scmp.ne.s32.totalorder %s126, %s128
    %p132 = scmp.eq.s32.totalorder %s15, 0
    %p133 = por %p131, %p132
    %p134 = scmp.ne.s32.totalorder %s126, %s128
    %p135 = scmp.eq.s32.totalorder %s20, 1
    %p136 = por %p134, %p135
    %p137 = scmp.ne.s32.totalorder %s128, %s129
    %p138 = scmp.eq.s32.totalorder %s20, 0
    %p139 = por %p137, %p138
    %p140 = scmp.ne.s32.totalorder %s128, %s129
    %p141 = scmp.eq.s32.totalorder %s21, 1
    %p142 = por %p140, %p141
    %p144 = scmp.ne.s32.totalorder %s129, %s143
    %p145 = scmp.eq.s32.totalorder %s21, 0
    %p146 = por %p144, %p145
    %s147 = ssub.s32 %s22, %s34
    %s148 = ssub.s32 %s23, %s30
    %s149 = sor.u32 %s147, %s148
    %p150 = scmp.eq.s32.totalorder %s149, 0
    %s152 = sadd.s32 %s151, 1
    %s153 = scalar_select %p150, %s151, %s152
    %p156 = pneg %p150
    %p157 = scmp.eq.s32.totalorder %s15, 1
    %p158 = por %p156, %p157
    %p159 = scmp.ne.s32.totalorder %s151, %s154
    %p160 = scmp.eq.s32.totalorder %s15, 0
    %p161 = por %p159, %p160
    %p162 = scmp.ne.s32.totalorder %s151, %s154
    %p163 = scmp.eq.s32.totalorder %s20, 1
    %p164 = por %p162, %p163
    %p165 = scmp.ne.s32.totalorder %s154, %s155
    %p166 = scmp.eq.s32.totalorder %s20, 0
    %p167 = por %p165, %p166
    %p168 = scmp.ne.s32.totalorder %s154, %s155
    %p169 = scmp.eq.s32.totalorder %s21, 1
    %p170 = por %p168, %p169
    %p172 = scmp.ne.s32.totalorder %s155, %s171
    %p173 = scmp.eq.s32.totalorder %s21, 0
    %p174 = por %p172, %p173
    %s175 = ssub.s32 %s22, %s34
    %s176 = ssub.s32 %s23, %s30
    %s177 = sor.u32 %s175, %s176
    %p178 = scmp.eq.s32.totalorder %s177, 0
    %s180 = sadd.s32 %s179, 1
    %s181 = scalar_select %p178, %s179, %s180
    %p184 = pneg %p178
    %p185 = scmp.eq.s32.totalorder %s15, 1
    %p186 = por %p184, %p185
    %p187 = scmp.ne.s32.totalorder %s179, %s182
    %p188 = scmp.eq.s32.totalorder %s15, 0
    %p189 = por %p187, %p188
    %p190 = scmp.ne.s32.totalorder %s179, %s182
    %p191 = scmp.eq.s32.totalorder %s20, 1
    %p192 = por %p190, %p191
    %p193 = scmp.ne.s32.totalorder %s182, %s183
    %p194 = scmp.eq.s32.totalorder %s20, 0
    %p195 = por %p193, %p194
    %p196 = scmp.ne.s32.totalorder %s182, %s183
    %p197 = scmp.eq.s32.totalorder %s21, 1
    %p198 = por %p196, %p197
    %p200 = scmp.ne.s32.totalorder %s183, %s199
    %p201 = scmp.eq.s32.totalorder %s21, 0
    %p202 = por %p200, %p201
    %s203 = ssub.s32 %s22, %s34
    %s204 = ssub.s32 %s23, %s30
    %s205 = sor.u32 %s203, %s204
    %p206 = scmp.eq.s32.totalorder %s205, 0
    %s208 = sadd.s32 %s207, 1
    %s209 = scalar_select %p206, %s207, %s208
    %p212 = pneg %p206
    %p213 = scmp.eq.s32.totalorder %s15, 1
    %p214 = por %p212, %p213
    %p215 = scmp.ne.s32.totalorder %s207, %s210
    %p216 = scmp.eq.s32.totalorder %s15, 0
    %p217 = por %p215, %p216
    %p218 = scmp.ne.s32.totalorder %s207, %s210
    %p219 = scmp.eq.s32.totalorder %s20, 1
    %p220 = por %p218, %p219
    %p221 = scmp.ne.s32.totalorder %s210, %s211
    %p222 = scmp.eq.s32.totalorder %s20, 0
    %p223 = por %p221, %p222
    %p224 = scmp.ne.s32.totalorder %s210, %s211
    %p225 = scmp.eq.s32.totalorder %s21, 1
    %p226 = por %p224, %p225
    %p228 = scmp.ne.s32.totalorder %s211, %s227
    %p229 = scmp.eq.s32.totalorder %s21, 0
    %p230 = por %p228, %p229
    %s231 = ssub.s32 %s22, %s34
    %s232 = ssub.s32 %s23, %s30
    %s233 = sor.u32 %s231, %s232
    %p234 = scmp.eq.s32.totalorder %s233, 0
    %s236 = sadd.s32 %s235, 1
    %s237 = scalar_select %p234, %s235, %s236
    %p240 = pneg %p234
    %p241 = scmp.eq.s32.totalorder %s15, 1
    %p242 = por %p240, %p241
    %p243 = scmp.ne.s32.totalorder %s235, %s238
    %p244 = scmp.eq.s32.totalorder %s15, 0
    %p245 = por %p243, %p244
    %p246 = scmp.ne.s32.totalorder %s235, %s238
    %p247 = scmp.eq.s32.totalorder %s20, 1
    %p248 = por %p246, %p247
    %p249 = scmp.ne.s32.totalorder %s238, %s239
    %p250 = scmp.eq.s32.totalorder %s20, 0
    %p251 = por %p249, %p250
    %p252 = scmp.ne.s32.totalorder %s238, %s239
    %p253 = scmp.eq.s32.totalorder %s21, 1
    %p254 = por %p252, %p253
    %p256 = scmp.ne.s32.totalorder %s239, %s255
    %p257 = scmp.eq.s32.totalorder %s21, 0
    %p258 = por %p256, %p257
    %p259 = scmp.le.s32.totalorder 1, %s15
    %p260 = scmp.lt.s32.totalorder %s15, 3
    %p261 = pnand %p259, %p260
    %p262 = pneg %p261
    // Predicated region
    $region9: #{quantize_ema_forward.1} parent=5 // pred_check
      _
    $region10: #{quantize_ema_forward.1} parent=5 // pred_check_branch
      %264 = sbr.rel (%p261) target = $region12
    $region11: #{quantize_ema_forward.1} parent=5 // pred_region
      %s265 = ssub.s32 %s15, 1
      // Predicated region
      $region13: #{quantize_ema_forward.1} parent=11 // pred_check
        %p266 = pneg %p76
      $region14: #{quantize_ema_forward.1} parent=11 // pred_check_branch
        %268 = sbr.rel (%p266) target = $region16
      $region15: #{quantize_ema_forward.1} parent=11 // pred_region
        _
      $region16: #{quantize_ema_forward.1} parent=11 // pred_fallthru
        _
      // Predicated region
      $region17: #{quantize_ema_forward.1} parent=11 // pred_check
        %p269 = pneg %p97
      $region18: #{quantize_ema_forward.1} parent=11 // pred_check_branch
        %271 = sbr.rel (%p269) target = $region20
      $region19: #{quantize_ema_forward.1} parent=11 // pred_region
        _
      $region20: #{quantize_ema_forward.1} parent=11 // pred_fallthru
        _
      // Predicated region
      $region21: #{quantize_ema_forward.1} parent=11 // pred_check
        %p272 = pneg %p118
      $region22: #{quantize_ema_forward.1} parent=11 // pred_check_branch
        %274 = sbr.rel (%p272) target = $region24
      $region23: #{quantize_ema_forward.1} parent=11 // pred_region
        _
      $region24: #{quantize_ema_forward.1} parent=11 // pred_fallthru
        _
      // Predicated region
      $region25: #{quantize_ema_forward.1} parent=11 // pred_check
        %p275 = pneg %p139
      $region26: #{quantize_ema_forward.1} parent=11 // pred_check_branch
        %277 = sbr.rel (%p275) target = $region28
      $region27: #{quantize_ema_forward.1} parent=11 // pred_region
        _
      $region28: #{quantize_ema_forward.1} parent=11 // pred_fallthru
        _
    $region12: #{quantize_ema_forward.1} parent=5 // pred_fallthru
      _
    %p278 = scmp.lt.s32.totalorder %s15, 2
    // Predicated region
    $region29: #{quantize_ema_forward.1} parent=5 // pred_check
      %p279 = pneg %p278
    $region30: #{quantize_ema_forward.1} parent=5 // pred_check_branch
      %281 = sbr.rel (%p279) target = $region32
    $region31: #{quantize_ema_forward.1} parent=5 // pred_region
      // Predicated region
      $region33: #{quantize_ema_forward.1} parent=31 // pred_check
        %p282 = pneg %p49
      $region34: #{quantize_ema_forward.1} parent=31 // pred_check_branch
        %284 = sbr.rel (%p282) target = $region36
      $region35: #{quantize_ema_forward.1} parent=31 // pred_region
        %p285 = scmp.lt.s32.totalorder %s22, 1
        %s286 = scalar_select %p285, %s22, 1
        %p287 = scmp.lt.s32.totalorder %s23, 0
        %s288 = scalar_select %p287, %s23, 0
        %s289 = smul.addr %s286, 4
        %s290 = sadd.s32 %s288, %s289
        %s291 = smul.addr %s290, 8
        %s292 = scalar_lea.vmem %s0, %s291
      $region36: #{quantize_ema_forward.1} parent=31 // pred_fallthru
        _
    $region32: #{quantize_ema_forward.1} parent=5 // pred_fallthru
      _
    %p293 = scmp.le.s32.totalorder 1, %s15
    %p294 = scmp.lt.s32.totalorder %s15, 3
    %p295 = pnand %p293, %p294
    %p296 = pneg %p295
    // Predicated region
    $region37: #{quantize_ema_forward.1} parent=5 // pred_check
      _
    $region38: #{quantize_ema_forward.1} parent=5 // pred_check_branch
      %298 = sbr.rel (%p295) target = $region40
    $region39: #{quantize_ema_forward.1} parent=5 // pred_region
      %s299 = ssub.s32 %s15, 1
      %p300 = scmp.lt.s32.totalorder %s24, 1
      %s301 = scalar_select %p300, %s24, 1
      %p302 = scmp.lt.s32.totalorder %s25, 0
      %s303 = scalar_select %p302, %s25, 0
      %s304 = smul.addr %s301, 4
      %s305 = sadd.s32 %s303, %s304
      %s306 = smul.addr %s305, 8
      %s307 = scalar_lea.vmem %s0, %s306
      %p308 = pneg %p55
      %p309 = pneg %p52
      %p310 = pneg %p76
      %p311 = pneg %p73
      %p312 = pneg %p97
      %p313 = pneg %p94
      %p314 = pneg %p118
      %p315 = pneg %p115
      %p316 = pneg %p139
      %p317 = pneg %p136
      %p318 = pneg %p167
      %p319 = pneg %p164
      %p320 = scmp.lt.s32.totalorder %s24, 1
      %s321 = scalar_select %p320, %s24, 1
      %p322 = scmp.lt.s32.totalorder %s25, 0
      %s323 = scalar_select %p322, %s25, 0
      %s324 = smul.addr %s321, 4
      %s325 = sadd.s32 %s323, %s324
      %s326 = smul.addr %s325, 8
      %s327 = scalar_lea.vmem %s5, %s326
      %p328 = pneg %p195
      %p329 = pneg %p192
      %p330 = scmp.lt.s32.totalorder %s24, 1
      %s331 = scalar_select %p330, %s24, 1
      %p332 = scmp.lt.s32.totalorder %s25, 0
      %s333 = scalar_select %p332, %s25, 0
      %s334 = sadd.s32 %s333, %s331
      %s335 = scalar_lea.vmem %s6, %s334
      %p336 = pneg %p223
      %p337 = pneg %p220
      %p338 = scmp.lt.s32.totalorder %s24, 1
      %s339 = scalar_select %p338, %s24, 1
      %p340 = scmp.lt.s32.totalorder %s25, 0
      %s341 = scalar_select %p340, %s25, 0
      %s342 = sadd.s32 %s341, %s339
      %s343 = scalar_lea.vmem %s7, %s342
      %p344 = pneg %p251
      %p345 = pneg %p248
      %p346 = scmp.lt.s32.totalorder %s24, 1
      %s347 = scalar_select %p346, %s24, 1
      %p348 = scmp.lt.s32.totalorder %s25, 0
      %s349 = scalar_select %p348, %s25, 0
      %s350 = smul.addr %s349, 16
      %s351 = smul.addr %s347, 16
      %s352 = sadd.s32 %s350, %s351
      %s353 = smul.addr %s352, 8
      %s354 = scalar_lea.vmem %s8, %s353
      %p355 = scmp.lt.s32.totalorder %s24, 1
      %s356 = scalar_select %p355, %s24, 1
      %p357 = scmp.lt.s32.totalorder %s25, 0
      %s358 = scalar_select %p357, %s25, 0
      %s359 = smul.addr %s356, 4
      %s360 = sadd.s32 %s358, %s359
      %s361 = smul.addr %s360, 8
      %s362 = scalar_lea.vmem %s0, %s361
      %p363 = scmp.lt.s32.totalorder %s24, 1
      %s364 = scalar_select %p363, %s24, 1
      %p365 = scmp.lt.s32.totalorder %s25, 0
      %s366 = scalar_select %p365, %s25, 0
      %s367 = smul.addr %s364, 4
      %s368 = sadd.s32 %s366, %s367
      %s369 = smul.addr %s368, 8
      %s370 = scalar_lea.vmem %s5, %s369
      %p371 = scmp.lt.s32.totalorder %s24, 1
      %s372 = scalar_select %p371, %s24, 1
      %p373 = scmp.lt.s32.totalorder %s25, 0
      %s374 = scalar_select %p373, %s25, 0
      %s375 = sadd.s32 %s374, %s372
      %s376 = scalar_lea.vmem %s6, %s375
      %p377 = scmp.lt.s32.totalorder %s24, 1
      %s378 = scalar_select %p377, %s24, 1
      %p379 = scmp.lt.s32.totalorder %s25, 0
      %s380 = scalar_select %p379, %s25, 0
      %s381 = sadd.s32 %s380, %s378
      %s382 = scalar_lea.vmem %s7, %s381
      %p383 = scmp.lt.s32.totalorder %s24, 1
      %s384 = scalar_select %p383, %s24, 1
      %p385 = scmp.lt.s32.totalorder %s25, 0
      %s386 = scalar_select %p385, %s25, 0
      %s387 = smul.addr %s386, 16
      %s388 = smul.addr %s384, 16
      %s389 = sadd.s32 %s387, %s388
      %s390 = smul.addr %s389, 8
      %s391 = scalar_lea.vmem %s8, %s390
      %v392 = vld [vmem:[%s362] sm:$0xff]
      %v393 = vld [vmem:[%s362 + $0x8] sm:$0xff]
      %v394 = vld [vmem:[%s362 + $0x10] sm:$0xff]
      %v395 = vld [vmem:[%s362 + $0x18] sm:$0xff]
      %v396 = vld [vmem:[%s1] sm:$0xff]
      %v397 = vld [vmem:[%s1 + $0x8] sm:$0xff]
      %v398 = vld [vmem:[%s1 + $0x10] sm:$0xff]
      %v399 = vld [vmem:[%s1 + $0x18] sm:$0xff]
      %v400 = vld [vmem:[%s1 + $0x20] sm:$0xff]
      %v401 = vld [vmem:[%s1 + $0x28] sm:$0xff]
      %v402 = vld [vmem:[%s1 + $0x30] sm:$0xff]
      %v403 = vld [vmem:[%s1 + $0x38] sm:$0xff]
      %v404 = vld [vmem:[%s1 + $0x40] sm:$0xff]
      %v405 = vld [vmem:[%s1 + $0x48] sm:$0xff]
      %v406 = vld [vmem:[%s1 + $0x50] sm:$0xff]
      %v407 = vld [vmem:[%s1 + $0x58] sm:$0xff]
      %v408 = vld [vmem:[%s1 + $0x60] sm:$0xff]
      %v409 = vld [vmem:[%s1 + $0x68] sm:$0xff]
      %v410 = vld [vmem:[%s1 + $0x70] sm:$0xff]
      %v411 = vld [vmem:[%s1 + $0x78] sm:$0xff]
      %v412 = vld [vmem:[%s3] sm:$0xff]
      %v413 = vld [vmem:[%s3 + $0x8] sm:$0xff]
      %v414 = vld [vmem:[%s3 + $0x10] sm:$0xff]
      %v415 = vld [vmem:[%s3 + $0x18] sm:$0xff]
      %v416 = vld [vmem:[%s3 + $0x20] sm:$0xff]
      %v417 = vld [vmem:[%s3 + $0x28] sm:$0xff]
      %v418 = vld [vmem:[%s3 + $0x30] sm:$0xff]
      %v419 = vld [vmem:[%s3 + $0x38] sm:$0xff]
      %v420 = vld [vmem:[%s3 + $0x40] sm:$0xff]
      %v421 = vld [vmem:[%s3 + $0x48] sm:$0xff]
      %v422 = vld [vmem:[%s3 + $0x50] sm:$0xff]
      %v423 = vld [vmem:[%s3 + $0x58] sm:$0xff]
      %v424 = vld [vmem:[%s3 + $0x60] sm:$0xff]
      %v425 = vld [vmem:[%s3 + $0x68] sm:$0xff]
      %v426 = vld [vmem:[%s3 + $0x70] sm:$0xff]
      %v427 = vld [vmem:[%s3 + $0x78] sm:$0xff]
      %vm428 = vcmask 261120
      %v430 = vsel %vm428, %v396, 0
      %v433 = vsel %vm428, %v397, 0
      %v436 = vsel %vm428, %v398, 0
      %v439 = vsel %vm428, %v399, 0
      %v442 = vsel %vm428, %v400, 0
      %v445 = vsel %vm428, %v401, 0
      %v448 = vsel %vm428, %v402, 0
      %v451 = vsel %vm428, %v403, 0
      %v454 = vsel %vm428, %v404, 0
      %v457 = vsel %vm428, %v405, 0
      %v460 = vsel %vm428, %v406, 0
      %v463 = vsel %vm428, %v407, 0
      %v466 = vsel %vm428, %v408, 0
      %v469 = vsel %vm428, %v409, 0
      %v472 = vsel %vm428, %v410, 0
      %v475 = vsel %vm428, %v411, 0
      %477 = vmatprep.subr.mxu0 0.0
      %478 = vmatpush1.msra.mxu0 %v392
      %479 = vmatprep.subr.mxu0 0.0
      %480 = vmatpush1.msra.mxu0 %v393
      %481 = vmatprep.subr.mxu0 0.0
      %482 = vmatpush1.msra.mxu0 %v394
      %483 = vmatprep.subr.mxu0 0.0
      %484 = vmatpush1.msra.mxu0 %v395
      %485 = vmatprep.subr.mxu0 0.0
      %486 = vmatpush1.msra.mxu0 0.0
      %487 = vmatprep.subr.mxu0 0.0
      %488 = vmatpush1.msra.mxu0 0.0
      %489 = vmatprep.subr.mxu0 0.0
      %490 = vmatpush1.msra.mxu0 0.0
      %491 = vmatprep.subr.mxu0 0.0
      %492 = vmatpush1.msra.mxu0 0.0
      %493 = vmatprep.subr.mxu0 0.0
      %494 = vmatpush1.msra.mxu0 0.0
      %495 = vmatprep.subr.mxu0 0.0
      %496 = vmatpush1.msra.mxu0 0.0
      %497 = vmatprep.subr.mxu0 0.0
      %498 = vmatpush1.msra.mxu0 0.0
      %499 = vmatprep.subr.mxu0 0.0
      %500 = vmatpush1.msra.mxu0 0.0
      %501 = vmatprep.subr.mxu0 0.0
      %502 = vmatpush1.msra.mxu0 0.0
      %503 = vmatprep.subr.mxu0 0.0
      %504 = vmatpush1.msra.mxu0 0.0
      %505 = vmatprep.subr.mxu0 0.0
      %506 = vmatpush1.msra.mxu0 0.0
      %507 = vmatprep.subr.mxu0 0.0
      %508 = vmatpush1.msra.mxu0 0.0
      %509 = vmatprep.subr.mxu0 0.0
      %510 = vmatpush1.msra.mxu0 0.0
      %511 = vmatprep.subr.mxu0 0.0
      %512 = vmatpush1.msra.mxu0 0.0
      %513 = vmatprep.subr.mxu0 0.0
      %514 = vmatpush1.msra.mxu0 0.0
      %515 = vmatprep.subr.mxu0 0.0
      %516 = vmatpush1.msra.mxu0 0.0
      %517 = vmatprep.subr.mxu0 0.0
      %518 = vmatpush1.msra.mxu0 0.0
      %519 = vmatprep.subr.mxu0 0.0
      %520 = vmatpush1.msra.mxu0 0.0
      %521 = vmatprep.subr.mxu0 0.0
      %522 = vmatpush1.msra.mxu0 0.0
      %523 = vmatprep.subr.mxu0 0.0
      %524 = vmatpush1.msra.mxu0 0.0
      %525 = vmatprep.subr.mxu0 0.0
      %526 = vmatpush1.msra.mxu0 0.0
      %527 = vmatprep.subr.mxu0 0.0
      %528 = vmatpush1.msra.mxu0 0.0
      %529 = vmatprep.subr.mxu0 0.0
      %530 = vmatpush1.msra.mxu0 0.0
      %531 = vmatprep.subr.mxu0 0.0
      %532 = vmatpush1.msra.mxu0 0.0
      %533 = vmatprep.subr.mxu0 0.0
      %534 = vmatpush1.msra.mxu0 0.0
      %535 = vmatprep.subr.mxu0 0.0
      %536 = vmatpush1.msra.mxu0 0.0
      %537 = vmatprep.subr.mxu0 0.0
      %538 = vmatpush1.msra.mxu0 0.0
      %539 = vmatprep.subr.mxu0 0.0
      %540 = vmatpush1.msra.mxu0 0.0
      %541 = vmatprep.mubr.f32.mxu0 0.0
      %542 = vmatmul.mubr.f32.gmra.mrb[0].mxu0 %v430
      %v543 = vpop.f32.mrb[0].mxu0
      %v544 = vadd.f32 0.0, %v543
      %v545 = vpop.f32.mrb[0].mxu0
      %546 = vmatprep.mubr.f32.mxu0 0.0
      %547 = vmatmul.mubr.f32.gmra.mrb[0].mxu0 %v433
      %v548 = vpop.f32.mrb[0].mxu0
      %v549 = vadd.f32 0.0, %v548
      %v550 = vpop.f32.mrb[0].mxu0
      %551 = vmatprep.mubr.f32.mxu0 0.0
      %552 = vmatmul.mubr.f32.gmra.mrb[0].mxu0 %v436
      %v553 = vpop.f32.mrb[0].mxu0
      %v554 = vadd.f32 0.0, %v553
      %v555 = vpop.f32.mrb[0].mxu0
      %556 = vmatprep.mubr.f32.mxu0 0.0
      %557 = vmatmul.mubr.f32.gmra.mrb[0].mxu0 %v439
      %v558 = vpop.f32.mrb[0].mxu0
      %v559 = vadd.f32 0.0, %v558
      %v560 = vpop.f32.mrb[0].mxu0
      %561 = vmatprep.mubr.f32.mxu0 0.0
      %562 = vmatmul.mubr.f32.gmra.mrb[0].mxu0 %v442
      %v563 = vpop.f32.mrb[0].mxu0
      %v564 = vadd.f32 0.0, %v563
      %v565 = vpop.f32.mrb[0].mxu0
      %566 = vmatprep.mubr.f32.mxu0 0.0
      %567 = vmatmul.mubr.f32.gmra.mrb[0].mxu0 %v445
      %v568 = vpop.f32.mrb[0].mxu0
      %v569 = vadd.f32 0.0, %v568
      %v570 = vpop.f32.mrb[0].mxu0
      %571 = vmatprep.mubr.f32.mxu0 0.0
      %572 = vmatmul.mubr.f32.gmra.mrb[0].mxu0 %v448
      %v573 = vpop.f32.mrb[0].mxu0
      %v574 = vadd.f32 0.0, %v573
      %v575 = vpop.f32.mrb[0].mxu0
      %576 = vmatprep.mubr.f32.mxu0 0.0
      %577 = vmatmul.mubr.f32.gmra.mrb[0].mxu0 %v451
      %v578 = vpop.f32.mrb[0].mxu0
      %v579 = vadd.f32 0.0, %v578
      %v580 = vpop.f32.mrb[0].mxu0
      %581 = vmatprep.mubr.f32.mxu0 0.0
      %582 = vmatmul.mubr.f32.gmra.mrb[0].mxu0 %v454
      %v583 = vpop.f32.mrb[0].mxu0
      %v584 = vadd.f32 0.0, %v583
      %v585 = vpop.f32.mrb[0].mxu0
      %586 = vmatprep.mubr.f32.mxu0 0.0
      %587 = vmatmul.mubr.f32.gmra.mrb[0].mxu0 %v457
      %v588 = vpop.f32.mrb[0].mxu0
      %v589 = vadd.f32 0.0, %v588
      %v590 = vpop.f32.mrb[0].mxu0
      %591 = vmatprep.mubr.f32.mxu0 0.0
      %592 = vmatmul.mubr.f32.gmra.mrb[0].mxu0 %v460
      %v593 = vpop.f32.mrb[0].mxu0
      %v594 = vadd.f32 0.0, %v593
      %v595 = vpop.f32.mrb[0].mxu0
      %596 = vmatprep.mubr.f32.mxu0 0.0
      %597 = vmatmul.mubr.f32.gmra.mrb[0].mxu0 %v463
      %v598 = vpop.f32.mrb[0].mxu0
      %v599 = vadd.f32 0.0, %v598
      %v600 = vpop.f32.mrb[0].mxu0
      %601 = vmatprep.mubr.f32.mxu0 0.0
      %602 = vmatmul.mubr.f32.gmra.mrb[0].mxu0 %v466
      %v603 = vpop.f32.mrb[0].mxu0
      %v604 = vadd.f32 0.0, %v603
      %v605 = vpop.f32.mrb[0].mxu0
      %606 = vmatprep.mubr.f32.mxu0 0.0
      %607 = vmatmul.mubr.f32.gmra.mrb[0].mxu0 %v469
      %v608 = vpop.f32.mrb[0].mxu0
      %v609 = vadd.f32 0.0, %v608
      %v610 = vpop.f32.mrb[0].mxu0
      %611 = vmatprep.mubr.f32.mxu0 0.0
      %612 = vmatmul.mubr.f32.gmra.mrb[0].mxu0 %v472
      %v613 = vpop.f32.mrb[0].mxu0
      %v614 = vadd.f32 0.0, %v613
      %v615 = vpop.f32.mrb[0].mxu0
      %616 = vmatprep.mubr.f32.mxu0 0.0
      %617 = vmatmul.mubr.f32.gmra.mrb[0].mxu0 %v475
      %v618 = vpop.f32.mrb[0].mxu0
      %v619 = vadd.f32 0.0, %v618
      %v620 = vpop.f32.mrb[0].mxu0
      %621 = vdwg.mxu0
      %623 = vset.pattern.permute.xlu0 0
      %624 = vperm.xlu0 %623, %v412
      %v625 = vpop.permute.xlu0 %624
      %628 = vset.pattern.permute.xlu0 0
      %629 = vperm.xlu0 %628, %v413
      %v630 = vpop.permute.xlu0 %629
      %633 = vset.pattern.permute.xlu0 0
      %634 = vperm.xlu0 %633, %v414
      %v635 = vpop.permute.xlu0 %634
      %638 = vset.pattern.permute.xlu0 0
      %639 = vperm.xlu0 %638, %v415
      %v640 = vpop.permute.xlu0 %639
      %643 = vset.pattern.permute.xlu0 0
      %644 = vperm.xlu0 %643, %v416
      %v645 = vpop.permute.xlu0 %644
      %648 = vset.pattern.permute.xlu0 0
      %649 = vperm.xlu0 %648, %v417
      %v650 = vpop.permute.xlu0 %649
      %653 = vset.pattern.permute.xlu0 0
      %654 = vperm.xlu0 %653, %v418
      %v655 = vpop.permute.xlu0 %654
      %658 = vset.pattern.permute.xlu0 0
      %659 = vperm.xlu0 %658, %v419
      %v660 = vpop.permute.xlu0 %659
      %663 = vset.pattern.permute.xlu0 0
      %664 = vperm.xlu0 %663, %v420
      %v665 = vpop.permute.xlu0 %664
      %668 = vset.pattern.permute.xlu0 0
      %669 = vperm.xlu0 %668, %v421
      %v670 = vpop.permute.xlu0 %669
      %673 = vset.pattern.permute.xlu0 0
      %674 = vperm.xlu0 %673, %v422
      %v675 = vpop.permute.xlu0 %674
      %678 = vset.pattern.permute.xlu0 0
      %679 = vperm.xlu0 %678, %v423
      %v680 = vpop.permute.xlu0 %679
      %683 = vset.pattern.permute.xlu0 0
      %684 = vperm.xlu0 %683, %v424
      %v685 = vpop.permute.xlu0 %684
      %688 = vset.pattern.permute.xlu0 0
      %689 = vperm.xlu0 %688, %v425
      %v690 = vpop.permute.xlu0 %689
      %693 = vset.pattern.permute.xlu0 0
      %694 = vperm.xlu0 %693, %v426
      %v695 = vpop.permute.xlu0 %694
      %698 = vset.pattern.permute.xlu0 0
      %699 = vperm.xlu0 %698, %v427
      %v700 = vpop.permute.xlu0 %699
      %v702 = vsub.f32 %v625, %v544
      %v703 = vsub.f32 %v630, %v549
      %v704 = vsub.f32 %v635, %v554
      %v705 = vsub.f32 %v640, %v559
      %v706 = vsub.f32 %v645, %v564
      %v707 = vsub.f32 %v650, %v569
      %v708 = vsub.f32 %v655, %v574
      %v709 = vsub.f32 %v660, %v579
      %v710 = vsub.f32 %v665, %v584
      %v711 = vsub.f32 %v670, %v589
      %v712 = vsub.f32 %v675, %v594
      %v713 = vsub.f32 %v680, %v599
      %v714 = vsub.f32 %v685, %v604
      %v715 = vsub.f32 %v690, %v609
      %v716 = vsub.f32 %v695, %v614
      %v717 = vsub.f32 %v700, %v619
      %v718 = vld [vmem:[%s4] sm:$0xff]
      %v719 = vld [vmem:[%s4 + $0x8] sm:$0xff]
      %v720 = vld [vmem:[%s4 + $0x10] sm:$0xff]
      %v721 = vld [vmem:[%s4 + $0x18] sm:$0xff]
      %v722 = vld [vmem:[%s4 + $0x20] sm:$0xff]
      %v723 = vld [vmem:[%s4 + $0x28] sm:$0xff]
      %v724 = vld [vmem:[%s4 + $0x30] sm:$0xff]
      %v725 = vld [vmem:[%s4 + $0x38] sm:$0xff]
      %v726 = vld [vmem:[%s4 + $0x40] sm:$0xff]
      %v727 = vld [vmem:[%s4 + $0x48] sm:$0xff]
      %v728 = vld [vmem:[%s4 + $0x50] sm:$0xff]
      %v729 = vld [vmem:[%s4 + $0x58] sm:$0xff]
      %v730 = vld [vmem:[%s4 + $0x60] sm:$0xff]
      %v731 = vld [vmem:[%s4 + $0x68] sm:$0xff]
      %v732 = vld [vmem:[%s4 + $0x70] sm:$0xff]
      %v733 = vld [vmem:[%s4 + $0x78] sm:$0xff]
      %vm734 = vcmask 130048
      %v735 = vsel %vm734, %v702, inf
      %v736 = vsel %vm734, %v703, inf
      %v737 = vsel %vm734, %v704, inf
      %v738 = vsel %vm734, %v705, inf
      %v739 = vsel %vm734, %v706, inf
      %v740 = vmin.f32 %v735, %v739
      %v741 = vsel %vm734, %v707, inf
      %v742 = vmin.f32 %v736, %v741
      %v743 = vsel %vm734, %v708, inf
      %v744 = vmin.f32 %v737, %v743
      %v745 = vsel %vm734, %v709, inf
      %v746 = vmin.f32 %v738, %v745
      %v747 = vsel %vm734, %v710, inf
      %v748 = vmin.f32 %v740, %v747
      %v749 = vsel %vm734, %v711, inf
      %v750 = vmin.f32 %v742, %v749
      %v751 = vsel %vm734, %v712, inf
      %v752 = vmin.f32 %v744, %v751
      %v753 = vsel %vm734, %v713, inf
      %v754 = vmin.f32 %v746, %v753
      %v755 = vsel %vm734, %v714, inf
      %v756 = vmin.f32 %v748, %v755
      %v757 = vsel %vm734, %v715, inf
      %v758 = vmin.f32 %v750, %v757
      %v759 = vsel %vm734, %v716, inf
      %v760 = vmin.f32 %v752, %v759
      %v761 = vsel %vm734, %v717, inf
      %v762 = vmin.f32 %v754, %v761
      %v763 = vmin.f32 %v756, %v758
      %v764 = vmin.f32 %v760, %v762
      %v765 = vmin.f32 %v763, %v764
      %v766 = vrot.slane %v765, 4
      %v767 = vmin.f32 %v765, %v766
      %v768 = vrot.slane %v767, 2
      %v769 = vmin.f32 %v767, %v768
      %v770 = vrot.slane %v769, 1
      %v771 = vmin.f32 %v769, %v770
      %vm772 = vcmp.eq.f32.partialorder %v702, %v771
      %vm773 = vcmp.eq.f32.partialorder %v703, %v771
      %vm774 = vcmp.eq.f32.partialorder %v704, %v771
      %vm775 = vcmp.eq.f32.partialorder %v705, %v771
      %vm776 = vcmp.eq.f32.partialorder %v706, %v771
      %vm777 = vcmp.eq.f32.partialorder %v707, %v771
      %vm778 = vcmp.eq.f32.partialorder %v708, %v771
      %vm779 = vcmp.eq.f32.partialorder %v709, %v771
      %vm780 = vcmp.eq.f32.partialorder %v710, %v771
      %vm781 = vcmp.eq.f32.partialorder %v711, %v771
      %vm782 = vcmp.eq.f32.partialorder %v712, %v771
      %vm783 = vcmp.eq.f32.partialorder %v713, %v771
      %vm784 = vcmp.eq.f32.partialorder %v714, %v771
      %vm785 = vcmp.eq.f32.partialorder %v715, %v771
      %vm786 = vcmp.eq.f32.partialorder %v716, %v771
      %vm787 = vcmp.eq.f32.partialorder %v717, %v771
      %789 = vset.pattern.permute.xlu0 0
      %790 = vperm.xlu0 %789, %v718
      %v791 = vpop.permute.xlu0 %790
      %794 = vset.pattern.permute.xlu0 0
      %795 = vperm.xlu0 %794, %v719
      %v796 = vpop.permute.xlu0 %795
      %799 = vset.pattern.permute.xlu0 0
      %800 = vperm.xlu0 %799, %v720
      %v801 = vpop.permute.xlu0 %800
      %804 = vset.pattern.permute.xlu0 0
      %805 = vperm.xlu0 %804, %v721
      %v806 = vpop.permute.xlu0 %805
      %809 = vset.pattern.permute.xlu0 0
      %810 = vperm.xlu0 %809, %v722
      %v811 = vpop.permute.xlu0 %810
      %814 = vset.pattern.permute.xlu0 0
      %815 = vperm.xlu0 %814, %v723
      %v816 = vpop.permute.xlu0 %815
      %819 = vset.pattern.permute.xlu0 0
      %820 = vperm.xlu0 %819, %v724
      %v821 = vpop.permute.xlu0 %820
      %824 = vset.pattern.permute.xlu0 0
      %825 = vperm.xlu0 %824, %v725
      %v826 = vpop.permute.xlu0 %825
      %829 = vset.pattern.permute.xlu0 0
      %830 = vperm.xlu0 %829, %v726
      %v831 = vpop.permute.xlu0 %830
      %834 = vset.pattern.permute.xlu0 0
      %835 = vperm.xlu0 %834, %v727
      %v836 = vpop.permute.xlu0 %835
      %839 = vset.pattern.permute.xlu0 0
      %840 = vperm.xlu0 %839, %v728
      %v841 = vpop.permute.xlu0 %840
      %844 = vset.pattern.permute.xlu0 0
      %845 = vperm.xlu0 %844, %v729
      %v846 = vpop.permute.xlu0 %845
      %849 = vset.pattern.permute.xlu0 0
      %850 = vperm.xlu0 %849, %v730
      %v851 = vpop.permute.xlu0 %850
      %854 = vset.pattern.permute.xlu0 0
      %855 = vperm.xlu0 %854, %v731
      %v856 = vpop.permute.xlu0 %855
      %859 = vset.pattern.permute.xlu0 0
      %860 = vperm.xlu0 %859, %v732
      %v861 = vpop.permute.xlu0 %860
      %864 = vset.pattern.permute.xlu0 0
      %865 = vperm.xlu0 %864, %v733
      %v866 = vpop.permute.xlu0 %865
      %v868 = vsel %vm772, %v791, 128.0
      %v869 = vsel %vm773, %v796, 128.0
      %v870 = vsel %vm774, %v801, 128.0
      %v871 = vsel %vm775, %v806, 128.0
      %v872 = vsel %vm776, %v811, 128.0
      %v873 = vsel %vm777, %v816, 128.0
      %v874 = vsel %vm778, %v821, 128.0
      %v875 = vsel %vm779, %v826, 128.0
      %v876 = vsel %vm780, %v831, 128.0
      %v877 = vsel %vm781, %v836, 128.0
      %v878 = vsel %vm782, %v841, 128.0
      %v879 = vsel %vm783, %v846, 128.0
      %v880 = vsel %vm784, %v851, 128.0
      %v881 = vsel %vm785, %v856, 128.0
      %v882 = vsel %vm786, %v861, 128.0
      %v883 = vsel %vm787, %v866, 128.0
      %v884 = vsel %vm734, %v868, inf
      %v885 = vsel %vm734, %v869, inf
      %v886 = vsel %vm734, %v870, inf
      %v887 = vsel %vm734, %v871, inf
      %v888 = vsel %vm734, %v872, inf
      %v889 = vmin.f32 %v884, %v888
      %v890 = vsel %vm734, %v873, inf
      %v891 = vmin.f32 %v885, %v890
      %v892 = vsel %vm734, %v874, inf
      %v893 = vmin.f32 %v886, %v892
      %v894 = vsel %vm734, %v875, inf
      %v895 = vmin.f32 %v887, %v894
      %v896 = vsel %vm734, %v876, inf
      %v897 = vmin.f32 %v889, %v896
      %v898 = vsel %vm734, %v877, inf
      %v899 = vmin.f32 %v891, %v898
      %v900 = vsel %vm734, %v878, inf
      %v901 = vmin.f32 %v893, %v900
      %v902 = vsel %vm734, %v879, inf
      %v903 = vmin.f32 %v895, %v902
      %v904 = vsel %vm734, %v880, inf
      %v905 = vmin.f32 %v897, %v904
      %v906 = vsel %vm734, %v881, inf
      %v907 = vmin.f32 %v899, %v906
      %v908 = vsel %vm734, %v882, inf
      %v909 = vmin.f32 %v901, %v908
      %v910 = vsel %vm734, %v883, inf
      %v911 = vmin.f32 %v903, %v910
      %v912 = vmin.f32 %v905, %v907
      %v913 = vmin.f32 %v909, %v911
      %v914 = vmin.f32 %v912, %v913
      %v915 = vrot.slane %v914, 4
      %v916 = vmin.f32 %v914, %v915
      %v917 = vrot.slane %v916, 2
      %v918 = vmin.f32 %v916, %v917
      %v919 = vrot.slane %v918, 1
      %v920 = vmin.f32 %v918, %v919
      %vm921 = vcmp.eq.f32.partialorder %v791, %v920
      %vm922 = vcmp.eq.f32.partialorder %v796, %v920
      %vm923 = vcmp.eq.f32.partialorder %v801, %v920
      %vm924 = vcmp.eq.f32.partialorder %v806, %v920
      %vm925 = vcmp.eq.f32.partialorder %v811, %v920
      %vm926 = vcmp.eq.f32.partialorder %v816, %v920
      %vm927 = vcmp.eq.f32.partialorder %v821, %v920
      %vm928 = vcmp.eq.f32.partialorder %v826, %v920
      %vm929 = vcmp.eq.f32.partialorder %v831, %v920
      %vm930 = vcmp.eq.f32.partialorder %v836, %v920
      %vm931 = vcmp.eq.f32.partialorder %v841, %v920
      %vm932 = vcmp.eq.f32.partialorder %v846, %v920
      %vm933 = vcmp.eq.f32.partialorder %v851, %v920
      %vm934 = vcmp.eq.f32.partialorder %v856, %v920
      %vm935 = vcmp.eq.f32.partialorder %v861, %v920
      %vm936 = vcmp.eq.f32.partialorder %v866, %v920
      %v937 = vsel %vm921, 1, 0
      %v938 = vsel %vm922, 1, 0
      %v939 = vsel %vm923, 1, 0
      %v940 = vsel %vm924, 1, 0
      %v941 = vsel %vm925, 1, 0
      %v942 = vsel %vm926, 1, 0
      %v943 = vsel %vm927, 1, 0
      %v944 = vsel %vm928, 1, 0
      %v945 = vsel %vm929, 1, 0
      %v946 = vsel %vm930, 1, 0
      %v947 = vsel %vm931, 1, 0
      %v948 = vsel %vm932, 1, 0
      %v949 = vsel %vm933, 1, 0
      %v950 = vsel %vm934, 1, 0
      %v951 = vsel %vm935, 1, 0
      %v952 = vsel %vm936, 1, 0
      %v953 = vcvt.s32.f32 %v937
      %v954 = vcvt.s32.f32 %v938
      %v955 = vcvt.s32.f32 %v939
      %v956 = vcvt.s32.f32 %v940
      %v957 = vcvt.s32.f32 %v941
      %v958 = vcvt.s32.f32 %v942
      %v959 = vcvt.s32.f32 %v943
      %v960 = vcvt.s32.f32 %v944
      %v961 = vcvt.s32.f32 %v945
      %v962 = vcvt.s32.f32 %v946
      %v963 = vcvt.s32.f32 %v947
      %v964 = vcvt.s32.f32 %v948
      %v965 = vcvt.s32.f32 %v949
      %v966 = vcvt.s32.f32 %v950
      %v967 = vcvt.s32.f32 %v951
      %v968 = vcvt.s32.f32 %v952
      %v969 = vld [vmem:[%s2] sm:$0xff]
      %v970 = vld [vmem:[%s2 + $0x8] sm:$0xff]
      %v971 = vld [vmem:[%s2 + $0x10] sm:$0xff]
      %v972 = vld [vmem:[%s2 + $0x18] sm:$0xff]
      %973 = vmatprep.subr.mxu0 0.0
      %974 = vmatpush1.msra.mxu0 %v953
      %975 = vmatprep.subr.mxu0 0.0
      %976 = vmatpush1.msra.mxu0 %v954
      %977 = vmatprep.subr.mxu0 0.0
      %978 = vmatpush1.msra.mxu0 %v955
      %979 = vmatprep.subr.mxu0 0.0
      %980 = vmatpush1.msra.mxu0 %v956
      %981 = vmatprep.subr.mxu0 0.0
      %982 = vmatpush1.msra.mxu0 %v957
      %983 = vmatprep.subr.mxu0 0.0
      %984 = vmatpush1.msra.mxu0 %v958
      %985 = vmatprep.subr.mxu0 0.0
      %986 = vmatpush1.msra.mxu0 %v959
      %987 = vmatprep.subr.mxu0 0.0
      %988 = vmatpush1.msra.mxu0 %v960
      %989 = vmatprep.subr.mxu0 0.0
      %990 = vmatpush1.msra.mxu0 %v961
      %991 = vmatprep.subr.mxu0 0.0
      %992 = vmatpush1.msra.mxu0 %v962
      %993 = vmatprep.subr.mxu0 0.0
      %994 = vmatpush1.msra.mxu0 %v963
      %995 = vmatprep.subr.mxu0 0.0
      %996 = vmatpush1.msra.mxu0 %v964
      %997 = vmatprep.subr.mxu0 0.0
      %998 = vmatpush1.msra.mxu0 %v965
      %999 = vmatprep.subr.mxu0 0.0
      %1000 = vmatpush1.msra.mxu0 %v966
      %1001 = vmatprep.subr.mxu0 0.0
      %1002 = vmatpush1.msra.mxu0 %v967
      %1003 = vmatprep.subr.mxu0 0.0
      %1004 = vmatpush1.msra.mxu0 %v968
      %1005 = vmatprep.subr.mxu0 0.0
      %1006 = vmatpush1.msra.mxu0 0.0
      %1007 = vmatprep.subr.mxu0 0.0
      %1008 = vmatpush1.msra.mxu0 0.0
      %1009 = vmatprep.subr.mxu0 0.0
      %1010 = vmatpush1.msra.mxu0 0.0
      %1011 = vmatprep.subr.mxu0 0.0
      %1012 = vmatpush1.msra.mxu0 0.0
      %1013 = vmatprep.subr.mxu0 0.0
      %1014 = vmatpush1.msra.mxu0 0.0
      %1015 = vmatprep.subr.mxu0 0.0
      %1016 = vmatpush1.msra.mxu0 0.0
      %1017 = vmatprep.subr.mxu0 0.0
      %1018 = vmatpush1.msra.mxu0 0.0
      %1019 = vmatprep.subr.mxu0 0.0
      %1020 = vmatpush1.msra.mxu0 0.0
      %1021 = vmatprep.subr.mxu0 0.0
      %1022 = vmatpush1.msra.mxu0 0.0
      %1023 = vmatprep.subr.mxu0 0.0
      %1024 = vmatpush1.msra.mxu0 0.0
      %1025 = vmatprep.subr.mxu0 0.0
      %1026 = vmatpush1.msra.mxu0 0.0
      %1027 = vmatprep.subr.mxu0 0.0
      %1028 = vmatpush1.msra.mxu0 0.0
      %1029 = vmatprep.subr.mxu0 0.0
      %1030 = vmatpush1.msra.mxu0 0.0
      %1031 = vmatprep.subr.mxu0 0.0
      %1032 = vmatpush1.msra.mxu0 0.0
      %1033 = vmatprep.subr.mxu0 0.0
      %1034 = vmatpush1.msra.mxu0 0.0
      %1035 = vmatprep.subr.mxu0 0.0
      %1036 = vmatpush1.msra.mxu0 0.0
      %1037 = vmatprep.mubr.f32.mxu0 0.0
      %1038 = vmatmul.mubr.f32.gmra.mrb[0].mxu0 %v969
      %v1039 = vpop.f32.mrb[0].mxu0
      %v1040 = vadd.f32 0.0, %v1039
      %v1041 = vpop.f32.mrb[0].mxu0
      %1042 = vmatprep.mubr.f32.mxu0 0.0
      %1043 = vmatmul.mubr.f32.gmra.mrb[0].mxu0 %v970
      %v1044 = vpop.f32.mrb[0].mxu0
      %v1045 = vadd.f32 0.0, %v1044
      %v1046 = vpop.f32.mrb[0].mxu0
      %1047 = vmatprep.mubr.f32.mxu0 0.0
      %1048 = vmatmul.mubr.f32.gmra.mrb[0].mxu0 %v971
      %v1049 = vpop.f32.mrb[0].mxu0
      %v1050 = vadd.f32 0.0, %v1049
      %v1051 = vpop.f32.mrb[0].mxu0
      %1052 = vmatprep.mubr.f32.mxu0 0.0
      %1053 = vmatmul.mubr.f32.gmra.mrb[0].mxu0 %v972
      %v1054 = vpop.f32.mrb[0].mxu0
      %v1055 = vadd.f32 0.0, %v1054
      %v1056 = vpop.f32.mrb[0].mxu0
      %1057 = vdwg.mxu0
      %1058 = vst.msk [vmem:[%s370] sm:$0xff] %vm734, %v1040
      %1059 = vst.msk [vmem:[%s370 + $0x8] sm:$0xff] %vm734, %v1045
      %1060 = vst.msk [vmem:[%s370 + $0x10] sm:$0xff] %vm734, %v1050
      %1061 = vst.msk [vmem:[%s370 + $0x18] sm:$0xff] %vm734, %v1055
      %v1062 = vcvt.f32.s32.to.zero.pseudo %v920
      %vm1063 = vcmask 122880
      %1064 = vst.msk [vmem:[%s376] sm:$0x1] %vm1063, %v1062
      %v1065 = vmul.f32 %v392, %v392
      %v1066 = vmul.f32 %v393, %v393
      %v1067 = vmul.f32 %v394, %v394
      %v1068 = vmul.f32 %v395, %v395
      %v1069 = vsel %vm734, %v1065, 0.0
      %v1070 = vsel %vm734, %v1066, 0.0
      %v1071 = vadd.f32 %v1069, %v1070
      %v1072 = vsel %vm734, %v1067, 0.0
      %v1073 = vadd.f32 %v1071, %v1072
      %v1074 = vsel %vm734, %v1068, 0.0
      %v1075 = vadd.f32 %v1073, %v1074
      %1076 = vadd.xlane.f32.xlu0 %v1075
      %v1077 = vpop.xlane.xlu0 %1076
      %v1078 = vrot.slane %v1077, 4
      %v1079 = vadd.f32 %v1077, %v1078
      %v1080 = vrot.slane %v1079, 2
      %v1081 = vadd.f32 %v1079, %v1080
      %v1082 = vrot.slane %v1081, 1
      %v1083 = vadd.f32 %v1081, %v1082
      %s1084 = vtos %v1083
      %v1085 = vsel %vm1063, %v771, 0.0
      %1086 = vadd.xlane.f32.xlu0 %v1085
      %v1087 = vpop.xlane.xlu0 %1086
      %v1088 = vrot.slane %v1087, 4
      %v1089 = vadd.f32 %v1087, %v1088
      %v1090 = vrot.slane %v1089, 2
      %v1091 = vadd.f32 %v1089, %v1090
      %v1092 = vrot.slane %v1091, 1
      %v1093 = vadd.f32 %v1091, %v1092
      %s1094 = vtos %v1093
      %s1095 = sadd.f32 %s1084, %s1094
      %v1096 = vstv %s1095
      %vm1097 = vcmask 0
      %1098 = vst.msk [vmem:[%s382] sm:$0x1] %vm1097, %v1096
      %v1100 = vsel %vm734, %v953, 0
      %v1103 = vsel %vm734, %v954, 0
      %v1106 = vsel %vm734, %v955, 0
      %v1109 = vsel %vm734, %v956, 0
      %v1112 = vsel %vm734, %v957, 0
      %v1115 = vsel %vm734, %v958, 0
      %v1118 = vsel %vm734, %v959, 0
      %v1121 = vsel %vm734, %v960, 0
      %v1124 = vsel %vm734, %v961, 0
      %v1127 = vsel %vm734, %v962, 0
      %v1130 = vsel %vm734, %v963, 0
      %v1133 = vsel %vm734, %v964, 0
      %v1136 = vsel %vm734, %v965, 0
      %v1139 = vsel %vm734, %v966, 0
      %v1142 = vsel %vm734, %v967, 0
      %v1145 = vsel %vm734, %v968, 0
      %1147 = vmatprep.subr.mxu0 0.0
      %1148 = vmatpush1.msra.mxu0 1.0
      %1149 = vmatprep.subr.mxu0 0.0
      %1150 = vmatpush1.msra.mxu0 1.0
      %1151 = vmatprep.subr.mxu0 0.0
      %1152 = vmatpush1.msra.mxu0 0.0
      %1153 = vmatprep.subr.mxu0 0.0
      %1154 = vmatpush1.msra.mxu0 0.0
      %1155 = vmatprep.subr.mxu0 0.0
      %1156 = vmatpush1.msra.mxu0 0.0
      %1157 = vmatprep.subr.mxu0 0.0
      %1158 = vmatpush1.msra.mxu0 0.0
      %1159 = vmatprep.subr.mxu0 0.0
      %1160 = vmatpush1.msra.mxu0 0.0
      %1161 = vmatprep.subr.mxu0 0.0
      %1162 = vmatpush1.msra.mxu0 0.0
      %1163 = vmatprep.subr.mxu0 0.0
      %1164 = vmatpush1.msra.mxu0 0.0
      %1165 = vmatprep.subr.mxu0 0.0
      %1166 = vmatpush1.msra.mxu0 0.0
      %1167 = vmatprep.subr.mxu0 0.0
      %1168 = vmatpush1.msra.mxu0 0.0
      %1169 = vmatprep.subr.mxu0 0.0
      %1170 = vmatpush1.msra.mxu0 0.0
      %1171 = vmatprep.subr.mxu0 0.0
      %1172 = vmatpush1.msra.mxu0 0.0
      %1173 = vmatprep.subr.mxu0 0.0
      %1174 = vmatpush1.msra.mxu0 0.0
      %1175 = vmatprep.subr.mxu0 0.0
      %1176 = vmatpush1.msra.mxu0 0.0
      %1177 = vmatprep.subr.mxu0 0.0
      %1178 = vmatpush1.msra.mxu0 0.0
      %1179 = vmatprep.subr.mxu0 0.0
      %1180 = vmatpush1.msra.mxu0 0.0
      %1181 = vmatprep.subr.mxu0 0.0
      %1182 = vmatpush1.msra.mxu0 0.0
      %1183 = vmatprep.subr.mxu0 0.0
      %1184 = vmatpush1.msra.mxu0 0.0
      %1185 = vmatprep.subr.mxu0 0.0
      %1186 = vmatpush1.msra.mxu0 0.0
      %1187 = vmatprep.subr.mxu0 0.0
      %1188 = vmatpush1.msra.mxu0 0.0
      %1189 = vmatprep.subr.mxu0 0.0
      %1190 = vmatpush1.msra.mxu0 0.0
      %1191 = vmatprep.subr.mxu0 0.0
      %1192 = vmatpush1.msra.mxu0 0.0
      %1193 = vmatprep.subr.mxu0 0.0
      %1194 = vmatpush1.msra.mxu0 0.0
      %1195 = vmatprep.subr.mxu0 0.0
      %1196 = vmatpush1.msra.mxu0 0.0
      %1197 = vmatprep.subr.mxu0 0.0
      %1198 = vmatpush1.msra.mxu0 0.0
      %1199 = vmatprep.subr.mxu0 0.0
      %1200 = vmatpush1.msra.mxu0 0.0
      %1201 = vmatprep.subr.mxu0 0.0
      %1202 = vmatpush1.msra.mxu0 0.0
      %1203 = vmatprep.subr.mxu0 0.0
      %1204 = vmatpush1.msra.mxu0 0.0
      %1205 = vmatprep.subr.mxu0 0.0
      %1206 = vmatpush1.msra.mxu0 0.0
      %1207 = vmatprep.subr.mxu0 0.0
      %1208 = vmatpush1.msra.mxu0 0.0
      %1209 = vmatprep.subr.mxu0 0.0
      %1210 = vmatpush1.msra.mxu0 0.0
      %1211 = vmatprep.mubr.f32.mxu0 0.0
      %1212 = vmatmul.mubr.f32.gmra.mrb[0].mxu0 %v1100
      %v1213 = vpop.f32.mrb[0].mxu0
      %v1214 = vadd.f32 0.0, %v1213
      %v1215 = vpop.f32.mrb[0].mxu0
      %1216 = vmatprep.mubr.f32.mxu0 0.0
      %1217 = vmatmul.mubr.f32.gmra.mrb[0].mxu0 %v1103
      %v1218 = vpop.f32.mrb[0].mxu0
      %v1219 = vadd.f32 0.0, %v1218
      %v1220 = vpop.f32.mrb[0].mxu0
      %1221 = vmatprep.mubr.f32.mxu0 0.0
      %1222 = vmatmul.mubr.f32.gmra.mrb[0].mxu0 %v1106
      %v1223 = vpop.f32.mrb[0].mxu0
      %v1224 = vadd.f32 0.0, %v1223
      %v1225 = vpop.f32.mrb[0].mxu0
      %1226 = vmatprep.mubr.f32.mxu0 0.0
      %1227 = vmatmul.mubr.f32.gmra.mrb[0].mxu0 %v1109
      %v1228 = vpop.f32.mrb[0].mxu0
      %v1229 = vadd.f32 0.0, %v1228
      %v1230 = vpop.f32.mrb[0].mxu0
      %1231 = vmatprep.mubr.f32.mxu0 0.0
      %1232 = vmatmul.mubr.f32.gmra.mrb[0].mxu0 %v1112
      %v1233 = vpop.f32.mrb[0].mxu0
      %v1234 = vadd.f32 0.0, %v1233
      %v1235 = vpop.f32.mrb[0].mxu0
      %1236 = vmatprep.mubr.f32.mxu0 0.0
      %1237 = vmatmul.mubr.f32.gmra.mrb[0].mxu0 %v1115
      %v1238 = vpop.f32.mrb[0].mxu0
      %v1239 = vadd.f32 0.0, %v1238
      %v1240 = vpop.f32.mrb[0].mxu0
      %1241 = vmatprep.mubr.f32.mxu0 0.0
      %1242 = vmatmul.mubr.f32.gmra.mrb[0].mxu0 %v1118
      %v1243 = vpop.f32.mrb[0].mxu0
      %v1244 = vadd.f32 0.0, %v1243
      %v1245 = vpop.f32.mrb[0].mxu0
      %1246 = vmatprep.mubr.f32.mxu0 0.0
      %1247 = vmatmul.mubr.f32.gmra.mrb[0].mxu0 %v1121
      %v1248 = vpop.f32.mrb[0].mxu0
      %v1249 = vadd.f32 0.0, %v1248
      %v1250 = vpop.f32.mrb[0].mxu0
      %1251 = vmatprep.mubr.f32.mxu0 0.0
      %1252 = vmatmul.mubr.f32.gmra.mrb[0].mxu0 %v1124
      %v1253 = vpop.f32.mrb[0].mxu0
      %v1254 = vadd.f32 0.0, %v1253
      %v1255 = vpop.f32.mrb[0].mxu0
      %1256 = vmatprep.mubr.f32.mxu0 0.0
      %1257 = vmatmul.mubr.f32.gmra.mrb[0].mxu0 %v1127
      %v1258 = vpop.f32.mrb[0].mxu0
      %v1259 = vadd.f32 0.0, %v1258
      %v1260 = vpop.f32.mrb[0].mxu0
      %1261 = vmatprep.mubr.f32.mxu0 0.0
      %1262 = vmatmul.mubr.f32.gmra.mrb[0].mxu0 %v1130
      %v1263 = vpop.f32.mrb[0].mxu0
      %v1264 = vadd.f32 0.0, %v1263
      %v1265 = vpop.f32.mrb[0].mxu0
      %1266 = vmatprep.mubr.f32.mxu0 0.0
      %1267 = vmatmul.mubr.f32.gmra.mrb[0].mxu0 %v1133
      %v1268 = vpop.f32.mrb[0].mxu0
      %v1269 = vadd.f32 0.0, %v1268
      %v1270 = vpop.f32.mrb[0].mxu0
      %1271 = vmatprep.mubr.f32.mxu0 0.0
      %1272 = vmatmul.mubr.f32.gmra.mrb[0].mxu0 %v1136
      %v1273 = vpop.f32.mrb[0].mxu0
      %v1274 = vadd.f32 0.0, %v1273
      %v1275 = vpop.f32.mrb[0].mxu0
      %1276 = vmatprep.mubr.f32.mxu0 0.0
      %1277 = vmatmul.mubr.f32.gmra.mrb[0].mxu0 %v1139
      %v1278 = vpop.f32.mrb[0].mxu0
      %v1279 = vadd.f32 0.0, %v1278
      %v1280 = vpop.f32.mrb[0].mxu0
      %1281 = vmatprep.mubr.f32.mxu0 0.0
      %1282 = vmatmul.mubr.f32.gmra.mrb[0].mxu0 %v1142
      %v1283 = vpop.f32.mrb[0].mxu0
      %v1284 = vadd.f32 0.0, %v1283
      %v1285 = vpop.f32.mrb[0].mxu0
      %1286 = vmatprep.mubr.f32.mxu0 0.0
      %1287 = vmatmul.mubr.f32.gmra.mrb[0].mxu0 %v1145
      %v1288 = vpop.f32.mrb[0].mxu0
      %v1289 = vadd.f32 0.0, %v1288
      %v1290 = vpop.f32.mrb[0].mxu0
      %1291 = vdwg.mxu0
      %vm1292 = vcmask 7168
      %1293 = vst.msk [vmem:[%s391] sm:$0xff] %vm1292, %v1214
      %1294 = vst.msk [vmem:[%s391 + $0x8] sm:$0xff] %vm1292, %v1219
      %1295 = vst.msk [vmem:[%s391 + $0x10] sm:$0xff] %vm1292, %v1224
      %1296 = vst.msk [vmem:[%s391 + $0x18] sm:$0xff] %vm1292, %v1229
      %1297 = vst.msk [vmem:[%s391 + $0x20] sm:$0xff] %vm1292, %v1234
      %1298 = vst.msk [vmem:[%s391 + $0x28] sm:$0xff] %vm1292, %v1239
      %1299 = vst.msk [vmem:[%s391 + $0x30] sm:$0xff] %vm1292, %v1244
      %1300 = vst.msk [vmem:[%s391 + $0x38] sm:$0xff] %vm1292, %v1249
      %1301 = vst.msk [vmem:[%s391 + $0x40] sm:$0xff] %vm1292, %v1254
      %1302 = vst.msk [vmem:[%s391 + $0x48] sm:$0xff] %vm1292, %v1259
      %1303 = vst.msk [vmem:[%s391 + $0x50] sm:$0xff] %vm1292, %v1264
      %1304 = vst.msk [vmem:[%s391 + $0x58] sm:$0xff] %vm1292, %v1269
      %1305 = vst.msk [vmem:[%s391 + $0x60] sm:$0xff] %vm1292, %v1274
      %1306 = vst.msk [vmem:[%s391 + $0x68] sm:$0xff] %vm1292, %v1279
      %1307 = vst.msk [vmem:[%s391 + $0x70] sm:$0xff] %vm1292, %v1284
      %1308 = vst.msk [vmem:[%s391 + $0x78] sm:$0xff] %vm1292, %v1289
      %p1309 = scmp.lt.s32.totalorder %s24, 1
      %s1310 = scalar_select %p1309, %s24, 1
      %p1311 = scmp.lt.s32.totalorder %s25, 0
      %s1312 = scalar_select %p1311, %s25, 0
      %s1313 = smul.addr %s1310, 4
      %s1314 = sadd.s32 %s1312, %s1313
      %s1315 = smul.addr %s1314, 8
      %s1316 = scalar_lea.vmem %s5, %s1315
      %p1317 = scmp.lt.s32.totalorder %s24, 1
      %s1318 = scalar_select %p1317, %s24, 1
      %p1319 = scmp.lt.s32.totalorder %s25, 0
      %s1320 = scalar_select %p1319, %s25, 0
      %s1321 = sadd.s32 %s1320, %s1318
      %s1322 = scalar_lea.vmem %s6, %s1321
      %p1323 = scmp.lt.s32.totalorder %s24, 1
      %s1324 = scalar_select %p1323, %s24, 1
      %p1325 = scmp.lt.s32.totalorder %s25, 0
      %s1326 = scalar_select %p1325, %s25, 0
      %s1327 = sadd.s32 %s1326, %s1324
      %s1328 = scalar_lea.vmem %s7, %s1327
      %p1329 = scmp.lt.s32.totalorder %s24, 1
      %s1330 = scalar_select %p1329, %s24, 1
      %p1331 = scmp.lt.s32.totalorder %s25, 0
      %s1332 = scalar_select %p1331, %s25, 0
      %s1333 = smul.addr %s1332, 16
      %s1334 = smul.addr %s1330, 16
      %s1335 = sadd.s32 %s1333, %s1334
      %s1336 = smul.addr %s1335, 8
      %s1337 = scalar_lea.vmem %s8, %s1336
      // Predicated region
      $region41: #{quantize_ema_forward.1} parent=39 // pred_check
        %p1338 = pneg %p164
      $region42: #{quantize_ema_forward.1} parent=39 // pred_check_branch
        %1340 = sbr.rel (%p1338) target = $region44
      $region43: #{quantize_ema_forward.1} parent=39 // pred_region
        _
      $region44: #{quantize_ema_forward.1} parent=39 // pred_fallthru
        _
      // Predicated region
      $region45: #{quantize_ema_forward.1} parent=39 // pred_check
        %p1341 = pneg %p192
      $region46: #{quantize_ema_forward.1} parent=39 // pred_check_branch
        %1343 = sbr.rel (%p1341) target = $region48
      $region47: #{quantize_ema_forward.1} parent=39 // pred_region
        _
      $region48: #{quantize_ema_forward.1} parent=39 // pred_fallthru
        _
      // Predicated region
      $region49: #{quantize_ema_forward.1} parent=39 // pred_check
        %p1344 = pneg %p220
      $region50: #{quantize_ema_forward.1} parent=39 // pred_check_branch
        %1346 = sbr.rel (%p1344) target = $region52
      $region51: #{quantize_ema_forward.1} parent=39 // pred_region
        _
      $region52: #{quantize_ema_forward.1} parent=39 // pred_fallthru
        _
      // Predicated region
      $region53: #{quantize_ema_forward.1} parent=39 // pred_check
        %p1347 = pneg %p248
      $region54: #{quantize_ema_forward.1} parent=39 // pred_check_branch
        %1349 = sbr.rel (%p1347) target = $region56
      $region55: #{quantize_ema_forward.1} parent=39 // pred_region
        _
      $region56: #{quantize_ema_forward.1} parent=39 // pred_fallthru
        _
    $region40: #{quantize_ema_forward.1} parent=5 // pred_fallthru
      _
    %p1350 = scmp.le.s32.totalorder 2, %s15
    // Predicated region
    $region57: #{quantize_ema_forward.1} parent=5 // pred_check
      %p1351 = pneg %p1350
    $region58: #{quantize_ema_forward.1} parent=5 // pred_check_branch
      %1353 = sbr.rel (%p1351) target = $region60
    $region59: #{quantize_ema_forward.1} parent=5 // pred_region
      %s1354 = ssub.s32 %s15, 2
      // Predicated region
      $region61: #{quantize_ema_forward.1} parent=59 // pred_check
        %p1355 = pneg %p170
      $region62: #{quantize_ema_forward.1} parent=59 // pred_check_branch
        %1357 = sbr.rel (%p1355) target = $region64
      $region63: #{quantize_ema_forward.1} parent=59 // pred_region
        %p1358 = scmp.lt.s32.totalorder %s26, 1
        %s1359 = scalar_select %p1358, %s26, 1
        %p1360 = scmp.lt.s32.totalorder %s27, 0
        %s1361 = scalar_select %p1360, %s27, 0
        %s1362 = smul.addr %s1359, 4
        %s1363 = sadd.s32 %s1361, %s1362
        %s1364 = smul.addr %s1363, 8
        %s1365 = scalar_lea.vmem %s5, %s1364
      $region64: #{quantize_ema_forward.1} parent=59 // pred_fallthru
        _
      // Predicated region
      $region65: #{quantize_ema_forward.1} parent=59 // pred_check
        %p1366 = pneg %p198
      $region66: #{quantize_ema_forward.1} parent=59 // pred_check_branch
        %1368 = sbr.rel (%p1366) target = $region68
      $region67: #{quantize_ema_forward.1} parent=59 // pred_region
        %p1369 = scmp.lt.s32.totalorder %s26, 1
        %s1370 = scalar_select %p1369, %s26, 1
        %p1371 = scmp.lt.s32.totalorder %s27, 0
        %s1372 = scalar_select %p1371, %s27, 0
        %s1373 = sadd.s32 %s1372, %s1370
        %s1374 = scalar_lea.vmem %s6, %s1373
      $region68: #{quantize_ema_forward.1} parent=59 // pred_fallthru
        _
      // Predicated region
      $region69: #{quantize_ema_forward.1} parent=59 // pred_check
        %p1375 = pneg %p226
      $region70: #{quantize_ema_forward.1} parent=59 // pred_check_branch
        %1377 = sbr.rel (%p1375) target = $region72
      $region71: #{quantize_ema_forward.1} parent=59 // pred_region
        %p1378 = scmp.lt.s32.totalorder %s26, 1
        %s1379 = scalar_select %p1378, %s26, 1
        %p1380 = scmp.lt.s32.totalorder %s27, 0
        %s1381 = scalar_select %p1380, %s27, 0
        %s1382 = sadd.s32 %s1381, %s1379
        %s1383 = scalar_lea.vmem %s7, %s1382
      $region72: #{quantize_ema_forward.1} parent=59 // pred_fallthru
        _
      // Predicated region
      $region73: #{quantize_ema_forward.1} parent=59 // pred_check
        %p1384 = pneg %p254
      $region74: #{quantize_ema_forward.1} parent=59 // pred_check_branch
        %1386 = sbr.rel (%p1384) target = $region76
      $region75: #{quantize_ema_forward.1} parent=59 // pred_region
        %p1387 = scmp.lt.s32.totalorder %s26, 1
        %s1388 = scalar_select %p1387, %s26, 1
        %p1389 = scmp.lt.s32.totalorder %s27, 0
        %s1390 = scalar_select %p1389, %s27, 0
        %s1391 = smul.addr %s1390, 16
        %s1392 = smul.addr %s1388, 16
        %s1393 = sadd.s32 %s1391, %s1392
        %s1394 = smul.addr %s1393, 8
        %s1395 = scalar_lea.vmem %s8, %s1394
      $region76: #{quantize_ema_forward.1} parent=59 // pred_fallthru
        _
    $region60: #{quantize_ema_forward.1} parent=5 // pred_fallthru
      _
  $region6: #{quantize_ema_forward.1} parent=0 // loop_footer
    %s19 = sadd.s32 1, %s15
  $region7: #{quantize_ema_forward.1} parent=0 // loop_footer_branch
    %14 = sbr.rel target = $region3
  $region8: #{quantize_ema_forward.1} parent=0 // loop_exit
    _

</llo_original>
